<compile_context>
chip_gen: v5e
topology: v5e:2x2
jax: 0.10.0
libtpu: 0.0.40
codegen_flags: <defaults>
</compile_context>

<pallas_src>
import math
import jax
import jax.numpy as jnp
from jax.experimental import pallas as pl
from jax.experimental.pallas import tpu as pltpu

# ---------------- small synthetic BERT config ----------------
VOCAB = 50            # char vocab
CHAR_DIM = 64         # char_emb_dim in CharEmbedderWord
HIDDEN = 32           # bert hidden_size (self.dim)
NUM_HEADS = 4
HEAD_DIM = HIDDEN // NUM_HEADS
INTER = 64            # bert intermediate_size
NUM_LAYERS = 2
NUM_LABELS = 2
MAX_CHAR_POS = 64     # stand-in for max_pos_embs=2048
MAX_WORD_POS = 32
LN_EPS = 1e-12

B = 2                 # batch
LC = 16               # char sequence length
W = 8                 # number of words (sum(word_lens) == LC)
BW = B * W            # flattened word tokens
BLC = B * LC          # flattened char tokens
NEG = -1e9            # additive mask value


# ---------------- in-kernel math helpers (pure jnp, traced inside the kernel) ----------------
def _layernorm(x, g, b):
    mu = jnp.mean(x, axis=-1, keepdims=True)
    var = jnp.mean(jnp.square(x - mu), axis=-1, keepdims=True)
    return (x - mu) * jax.lax.rsqrt(var + LN_EPS) * g + b


def _gelu(x):
    # tanh approximation of GELU
    return 0.5 * x * (1.0 + jnp.tanh(0.7978845608028654 * (x + 0.044715 * x * x * x)))


# ---------------- the single fused Pallas kernel ----------------
def fused_bert_kernel(char_ref, pool_ref, bias_ref, sel_ref, pos_ref,
                      c2w_w_ref, c2w_b_ref, eln_g_ref, eln_b_ref,
                      wq_ref, bq_ref, wk_ref, bk_ref, wv_ref, bv_ref,
                      wo_ref, bo_ref, g1_ref, b1_ref,
                      wi_ref, bi_ref, wd_ref, bd_ref, g2_ref, b2_ref,
                      wp_ref, bp_ref, wc_ref, bc_ref,
                      o_ref):
    f32 = jnp.float32

    # --- CharToWord: block-diagonal masked mean-pool over chars, then linear projection ---
    # pool_bd (BW, BLC) @ char_flat (BLC, CHAR_DIM) -> (BW, CHAR_DIM); pure 2D MXU matmuls.
    pooled = jnp.dot(pool_ref[...], char_ref[...], preferred_element_type=f32)
    word = jnp.dot(pooled, c2w_w_ref[...], preferred_element_type=f32) + c2w_b_ref[...]   # (BW, H)

    # --- BertEmbeddings (inputs_embeds path): + word position + token_type(0), LayerNorm ---
    x = _layernorm(word + pos_ref[...], eln_g_ref[...], eln_b_ref[...])                   # (BW, H)

    bias = bias_ref[...]                                                                  # (BW, BW)
    scale = 1.0 / math.sqrt(HEAD_DIM)
    lane = jax.lax.broadcasted_iota(jnp.int32, (1, HIDDEN), 1)

    for l in range(NUM_LAYERS):                 # static layer loop over stacked weights
        def dense(v, w, b):
            return jnp.dot(v, w, preferred_element_type=f32) + b

        q = dense(x, wq_ref[l], bq_ref[l]) * scale     # scale folded into q once
        k = dense(x, wk_ref[l], bk_ref[l])
        v = dense(x, wv_ref[l], bv_ref[l])

        # Multi-head attention with lane masks: no lane-axis slicing, no concatenate.
        # Each head's context lands directly in its own lane slice (other lanes masked to 0),
        # so summing over heads reconstructs the concatenated context exactly.
        ctx = jnp.zeros_like(x)
        for hd in range(NUM_HEADS):            # static tiny head loop
            hm = ((lane >= hd * HEAD_DIM) & (lane < (hd + 1) * HEAD_DIM)).astype(f32)     # (1, H)
            s = jax.lax.dot_general(q * hm, k, (((1,), (1,)), ((), ())),
                                    preferred_element_type=f32) + bias                    # (BW, BW)
            s = s - jnp.max(s, axis=-1, keepdims=True)
            p = jnp.exp(s)
            p = p * pl.reciprocal(jnp.sum(p, axis=-1, keepdims=True), approx=True)
            ctx = ctx + jnp.dot(p, v * hm, preferred_element_type=f32)                    # (BW, H)

        h1 = _layernorm(x + dense(ctx, wo_ref[l], bo_ref[l]), g1_ref[l], b1_ref[l])
        ff = _gelu(dense(h1, wi_ref[l], bi_ref[l]))
        x = _layernorm(h1 + dense(ff, wd_ref[l], bd_ref[l]), g2_ref[l], b2_ref[l])

    # --- Pooler (first word of each batch row, selected via one-hot matmul) + classifier ---
    first = jnp.dot(sel_ref[...], x, preferred_element_type=f32)                          # (B, H)
    pooled_cls = jnp.tanh(jnp.dot(first, wp_ref[...], preferred_element_type=f32) + bp_ref[...])
    o_ref[...] = (jnp.dot(pooled_cls, wc_ref[...], preferred_element_type=f32)
                  + bc_ref[...]).astype(o_ref.dtype)


# ---------------- pallas_call wrapper (single fused call, everything in VMEM) ----------------
def fused_forward_pallas(char_flat, pool_bd, attn_bias, sel, pos_tok, params, stk):
    args = [
        char_flat, pool_bd, attn_bias, sel, pos_tok,
        params['c2w_w'], params['c2w_b'], params['emb_ln_g'], params['emb_ln_b'],
        stk['wq'], stk['bq'], stk['wk'], stk['bk'], stk['wv'], stk['bv'],
        stk['wo'], stk['bo'], stk['g1'], stk['b1'],
        stk['wi'], stk['bi'], stk['wd'], stk['bd'], stk['g2'], stk['b2'],
        params['pooler_w'], params['pooler_b'], params['cls_w'], params['cls_b'],
    ]
    vmem_specs = [pl.BlockSpec(memory_space=pltpu.MemorySpace.VMEM) for _ in args]
    return pl.pallas_call(
        fused_bert_kernel,
        out_shape=jax.ShapeDtypeStruct((B, NUM_LABELS), jnp.float32),
        in_specs=vmem_specs,
        out_specs=pl.BlockSpec(memory_space=pltpu.MemorySpace.VMEM),
    )(*args)


# ---------------- parameters (deterministic, synthetic) ----------------
def init_params(key):
    ks = iter(jax.random.split(key, 64))

    def nrm(shape, scale=0.02):
        return (scale * jax.random.normal(next(ks), shape)).astype(jnp.float32)

    def zeros(shape):
        return jnp.zeros(shape, jnp.float32)

    def ones(shape):
        return jnp.ones(shape, jnp.float32)

    params = dict(
        char_emb=nrm((VOCAB, CHAR_DIM)),
        char_pos=nrm((1, MAX_CHAR_POS, CHAR_DIM), 1.0),   # nn.Parameter(torch.randn(...))
        c2w_w=nrm((CHAR_DIM, HIDDEN)),
        c2w_b=zeros((1, HIDDEN)),
        word_pos=nrm((MAX_WORD_POS, HIDDEN)),
        tok_type=nrm((2, HIDDEN)),
        emb_ln_g=ones((1, HIDDEN)),
        emb_ln_b=zeros((1, HIDDEN)),
        pooler_w=nrm((HIDDEN, HIDDEN)),
        pooler_b=zeros((1, HIDDEN)),
        cls_w=nrm((HIDDEN, NUM_LABELS)),
        cls_b=zeros((1, NUM_LABELS)),
    )
    layers = []
    for _ in range(NUM_LAYERS):
        layers.append(dict(
            wq=nrm((HIDDEN, HIDDEN)), bq=zeros((1, HIDDEN)),
            wk=nrm((HIDDEN, HIDDEN)), bk=zeros((1, HIDDEN)),
            wv=nrm((HIDDEN, HIDDEN)), bv=zeros((1, HIDDEN)),
            wo=nrm((HIDDEN, HIDDEN)), bo=zeros((1, HIDDEN)),
            g1=ones((1, HIDDEN)), b1=zeros((1, HIDDEN)),
            wi=nrm((HIDDEN, INTER)), bi=zeros((1, INTER)),
            wd=nrm((INTER, HIDDEN)), bd=zeros((1, HIDDEN)),
            g2=ones((1, HIDDEN)), b2=zeros((1, HIDDEN)),
        ))
    params['layers'] = layers
    return params


# ---------------- glue (cheap integer index math / embedding lookup, stays in plain JAX) ----------------
def build_pool_matrix(word_lens, char_mask):
    # word_lens: (B, W) int32; chars of word j are the contiguous span starting at exclusive cumsum.
    wl = word_lens.astype(jnp.int32)
    starts = jnp.cumsum(wl, axis=1) - wl                          # (B, W)
    ends = starts + wl
    c = jnp.arange(LC, dtype=jnp.int32)[None, None, :]            # (1, 1, LC)
    belongs = (c >= starts[:, :, None]) & (c < ends[:, :, None])
    belongs = belongs.astype(jnp.float32) * char_mask[:, None, :].astype(jnp.float32)
    counts = jnp.clip(jnp.sum(belongs, axis=-1, keepdims=True), 1.0, None)
    return belongs / counts                                       # (B, W, LC) mean-pool weights


def forward(params, input_ids, input_word_lens, attention_mask):
    # CharEmbedderWord: embedding lookup + dropout(eval) + char positional embeddings
    char_mask = attention_mask if attention_mask is not None else jnp.ones(input_ids.shape, jnp.float32)
    char_emb = params['char_emb'][input_ids] + params['char_pos'][:, :LC, :]          # (B, LC, CHAR_DIM)
    char_flat = char_emb.reshape(BLC, CHAR_DIM)

    # Block-diagonal pooling matrix so the whole batch is one 2D matmul inside the kernel.
    pool = build_pool_matrix(input_word_lens, char_mask)                              # (B, W, LC)
    eye_b = jnp.eye(B, dtype=jnp.float32)
    pool_bd = jnp.einsum('bwl,bc->bwcl', pool, eye_b).reshape(BW, BLC)                # (BW, BLC)

    # Flattened additive attention bias: block-diagonal over batch items + key padding mask.
    word_mask = (input_word_lens > 0)                                                 # (B, W) bool
    key_ok = word_mask.reshape(BW)
    batch_id = jnp.repeat(jnp.arange(B, dtype=jnp.int32), W)                          # (BW,)
    same_batch = batch_id[:, None] == batch_id[None, :]
    attn_bias = jnp.where(same_batch & key_ok[None, :], 0.0, NEG).astype(jnp.float32) # (BW, BW)

    # One-hot selector of each batch item's first word (BERT pooler input).
    sel = jax.nn.one_hot(jnp.arange(B) * W, BW, dtype=jnp.float32)                    # (B, BW)

    # Word position + token_type(0) embeddings, pre-tiled to the flat layout.
    pos_tok = jnp.tile(params['word_pos'][:W] + params['tok_type'][0][None, :], (B, 1))  # (BW, H)

    # Stack per-layer weights along a leading layer axis for the fused kernel.
    stk = {k: jnp.stack([lp[k] for lp in params['layers']]) for k in params['layers'][0]}

    return fused_forward_pallas(char_flat, pool_bd, attn_bias, sel, pos_tok, params, stk)


forward_jit = jax.jit(forward)


if __name__ == "__main__":
    root = jax.random.PRNGKey(0)
    k_params, k_ids = jax.random.split(root)
    params = init_params(k_params)

    input_ids = jax.random.randint(k_ids, (B, LC), 0, VOCAB, dtype=jnp.int32)
    input_word_lens = jnp.full((B, W), LC // W, dtype=jnp.int32)   # 8 words x 2 chars = 16 chars
    attention_mask = jnp.ones((B, LC), dtype=jnp.float32)

    logits = forward_jit(params, input_ids, input_word_lens, attention_mask)
    jax.block_until_ready(logits)
    assert logits.shape == (B, NUM_LABELS)
    print("KERNEL_OK")
</pallas_src>

<mosaic_0001>
module attributes {stable_mosaic.version = 11 : i64} {
  func.func @fused_bert_kernel(%arg0: memref<32x64xf32, #tpu.memory_space<vmem>>, %arg1: memref<16x32xf32, #tpu.memory_space<vmem>>, %arg2: memref<16x16xf32, #tpu.memory_space<vmem>>, %arg3: memref<2x16xf32, #tpu.memory_space<vmem>>, %arg4: memref<16x32xf32, #tpu.memory_space<vmem>>, %arg5: memref<64x32xf32, #tpu.memory_space<vmem>>, %arg6: memref<1x32xf32, #tpu.memory_space<vmem>>, %arg7: memref<1x32xf32, #tpu.memory_space<vmem>>, %arg8: memref<1x32xf32, #tpu.memory_space<vmem>>, %arg9: memref<2x32x32xf32, #tpu.memory_space<vmem>>, %arg10: memref<2x1x32xf32, #tpu.memory_space<vmem>>, %arg11: memref<2x32x32xf32, #tpu.memory_space<vmem>>, %arg12: memref<2x1x32xf32, #tpu.memory_space<vmem>>, %arg13: memref<2x32x32xf32, #tpu.memory_space<vmem>>, %arg14: memref<2x1x32xf32, #tpu.memory_space<vmem>>, %arg15: memref<2x32x32xf32, #tpu.memory_space<vmem>>, %arg16: memref<2x1x32xf32, #tpu.memory_space<vmem>>, %arg17: memref<2x1x32xf32, #tpu.memory_space<vmem>>, %arg18: memref<2x1x32xf32, #tpu.memory_space<vmem>>, %arg19: memref<2x32x64xf32, #tpu.memory_space<vmem>>, %arg20: memref<2x1x64xf32, #tpu.memory_space<vmem>>, %arg21: memref<2x64x32xf32, #tpu.memory_space<vmem>>, %arg22: memref<2x1x32xf32, #tpu.memory_space<vmem>>, %arg23: memref<2x1x32xf32, #tpu.memory_space<vmem>>, %arg24: memref<2x1x32xf32, #tpu.memory_space<vmem>>, %arg25: memref<32x32xf32, #tpu.memory_space<vmem>>, %arg26: memref<1x32xf32, #tpu.memory_space<vmem>>, %arg27: memref<32x2xf32, #tpu.memory_space<vmem>>, %arg28: memref<1x2xf32, #tpu.memory_space<vmem>>, %arg29: memref<2x2xf32, #tpu.memory_space<vmem>>) attributes {dimension_semantics = [], scalar_prefetch = 0 : i64, scratch_operands = 0 : i64, tpu.core_type = #tpu.core_type<tc>} {
    %c0 = arith.constant 0 : index
    %c0_0 = arith.constant 0 : index
    %0 = vector.load %arg1[%c0, %c0_0] : memref<16x32xf32, #tpu.memory_space<vmem>>, vector<16x32xf32>
    %c0_1 = arith.constant 0 : index
    %c0_2 = arith.constant 0 : index
    %1 = vector.load %arg0[%c0_1, %c0_2] : memref<32x64xf32, #tpu.memory_space<vmem>>, vector<32x64xf32>
    %cst = arith.constant dense<0.000000e+00> : vector<16x64xf32>
    %2 = tpu.matmul %0, %1, %cst {dimension_numbers = #tpu.dot_dimension_numbers<[1], [0], [0], [1], [0, 0, 1, 1], [], []>} : vector<16x32xf32>, vector<32x64xf32>, vector<16x64xf32> -> vector<16x64xf32>
    %c0_3 = arith.constant 0 : index
    %c0_4 = arith.constant 0 : index
    %3 = vector.load %arg5[%c0_3, %c0_4] : memref<64x32xf32, #tpu.memory_space<vmem>>, vector<64x32xf32>
    %cst_5 = arith.constant dense<0.000000e+00> : vector<16x32xf32>
    %4 = tpu.matmul %2, %3, %cst_5 {dimension_numbers = #tpu.dot_dimension_numbers<[1], [0], [0], [1], [0, 0, 1, 1], [], []>} : vector<16x64xf32>, vector<64x32xf32>, vector<16x32xf32> -> vector<16x32xf32>
    %c0_6 = arith.constant 0 : index
    %c0_7 = arith.constant 0 : index
    %5 = vector.load %arg6[%c0_6, %c0_7] : memref<1x32xf32, #tpu.memory_space<vmem>>, vector<1x32xf32>
    %6 = vector.broadcast %5 : vector<1x32xf32> to vector<16x32xf32>
    %7 = arith.addf %4, %6 : vector<16x32xf32>
    %c0_8 = arith.constant 0 : index
    %c0_9 = arith.constant 0 : index
    %8 = vector.load %arg4[%c0_8, %c0_9] : memref<16x32xf32, #tpu.memory_space<vmem>>, vector<16x32xf32>
    %9 = arith.addf %7, %8 : vector<16x32xf32>
    %c0_10 = arith.constant 0 : index
    %c0_11 = arith.constant 0 : index
    %10 = vector.load %arg7[%c0_10, %c0_11] : memref<1x32xf32, #tpu.memory_space<vmem>>, vector<1x32xf32>
    %c0_12 = arith.constant 0 : index
    %c0_13 = arith.constant 0 : index
    %11 = vector.load %arg8[%c0_12, %c0_13] : memref<1x32xf32, #tpu.memory_space<vmem>>, vector<1x32xf32>
    %cst_14 = arith.constant dense<0.000000e+00> : vector<16xf32>
    %12 = vector.multi_reduction <add>, %9, %cst_14 [1] : vector<16x32xf32> to vector<16xf32>
    %13 = vector.shape_cast %12 : vector<16xf32> to vector<16x1xf32>
    %cst_15 = arith.constant 3.200000e+01 : f32
    %14 = vector.broadcast %cst_15 : f32 to vector<16x1xf32>
    %15 = arith.divf %13, %14 : vector<16x1xf32>
    %16 = vector.broadcast %15 : vector<16x1xf32> to vector<16x32xf32>
    %17 = arith.subf %9, %16 : vector<16x32xf32>
    %18 = arith.mulf %17, %17 : vector<16x32xf32>
    %cst_16 = arith.constant dense<0.000000e+00> : vector<16xf32>
    %19 = vector.multi_reduction <add>, %18, %cst_16 [1] : vector<16x32xf32> to vector<16xf32>
    %20 = vector.shape_cast %19 : vector<16xf32> to vector<16x1xf32>
    %cst_17 = arith.constant 3.200000e+01 : f32
    %21 = vector.broadcast %cst_17 : f32 to vector<16x1xf32>
    %22 = arith.divf %20, %21 : vector<16x1xf32>
    %23 = vector.broadcast %15 : vector<16x1xf32> to vector<16x32xf32>
    %24 = arith.subf %9, %23 : vector<16x32xf32>
    %cst_18 = arith.constant 9.99999996E-13 : f32
    %25 = vector.broadcast %cst_18 : f32 to vector<16x1xf32>
    %26 = arith.addf %22, %25 : vector<16x1xf32>
    %27 = math.rsqrt %26 : vector<16x1xf32>
    %28 = vector.broadcast %27 : vector<16x1xf32> to vector<16x32xf32>
    %29 = arith.mulf %24, %28 : vector<16x32xf32>
    %30 = vector.broadcast %10 : vector<1x32xf32> to vector<16x32xf32>
    %31 = arith.mulf %29, %30 : vector<16x32xf32>
    %32 = vector.broadcast %11 : vector<1x32xf32> to vector<16x32xf32>
    %33 = arith.addf %31, %32 : vector<16x32xf32>
    %c0_19 = arith.constant 0 : index
    %c0_20 = arith.constant 0 : index
    %34 = vector.load %arg2[%c0_19, %c0_20] : memref<16x16xf32, #tpu.memory_space<vmem>>, vector<16x16xf32>
    %35 = tpu.iota {dimensions = array<i32: 1>} : vector<1x32xi32>
    %c0_21 = arith.constant 0 : index
    %c0_22 = arith.constant 0 : index
    %c0_23 = arith.constant 0 : index
    %36 = vector.load %arg9[%c0_21, %c0_22, %c0_23] : memref<2x32x32xf32, #tpu.memory_space<vmem>>, vector<1x32x32xf32>
    %37 = vector.shape_cast %36 : vector<1x32x32xf32> to vector<32x32xf32>
    %c0_24 = arith.constant 0 : index
    %c0_25 = arith.constant 0 : index
    %c0_26 = arith.constant 0 : index
    %38 = vector.load %arg10[%c0_24, %c0_25, %c0_26] : memref<2x1x32xf32, #tpu.memory_space<vmem>>, vector<1x1x32xf32>
    %39 = vector.shape_cast %38 : vector<1x1x32xf32> to vector<1x32xf32>
    %cst_27 = arith.constant dense<0.000000e+00> : vector<16x32xf32>
    %40 = tpu.matmul %33, %37, %cst_27 {dimension_numbers = #tpu.dot_dimension_numbers<[1], [0], [0], [1], [0, 0, 1, 1], [], []>} : vector<16x32xf32>, vector<32x32xf32>, vector<16x32xf32> -> vector<16x32xf32>
    %41 = vector.broadcast %39 : vector<1x32xf32> to vector<16x32xf32>
    %42 = arith.addf %40, %41 : vector<16x32xf32>
    %cst_28 = arith.constant 0.353553385 : f32
    %43 = vector.broadcast %cst_28 : f32 to vector<16x32xf32>
    %44 = arith.mulf %42, %43 : vector<16x32xf32>
    %c0_29 = arith.constant 0 : index
    %c0_30 = arith.constant 0 : index
    %c0_31 = arith.constant 0 : index
    %45 = vector.load %arg11[%c0_29, %c0_30, %c0_31] : memref<2x32x32xf32, #tpu.memory_space<vmem>>, vector<1x32x32xf32>
    %46 = vector.shape_cast %45 : vector<1x32x32xf32> to vector<32x32xf32>
    %c0_32 = arith.constant 0 : index
    %c0_33 = arith.constant 0 : index
    %c0_34 = arith.constant 0 : index
    %47 = vector.load %arg12[%c0_32, %c0_33, %c0_34] : memref<2x1x32xf32, #tpu.memory_space<vmem>>, vector<1x1x32xf32>
    %48 = vector.shape_cast %47 : vector<1x1x32xf32> to vector<1x32xf32>
    %cst_35 = arith.constant dense<0.000000e+00> : vector<16x32xf32>
    %49 = tpu.matmul %33, %46, %cst_35 {dimension_numbers = #tpu.dot_dimension_numbers<[1], [0], [0], [1], [0, 0, 1, 1], [], []>} : vector<16x32xf32>, vector<32x32xf32>, vector<16x32xf32> -> vector<16x32xf32>
    %50 = vector.broadcast %48 : vector<1x32xf32> to vector<16x32xf32>
    %51 = arith.addf %49, %50 : vector<16x32xf32>
    %c0_36 = arith.constant 0 : index
    %c0_37 = arith.constant 0 : index
    %c0_38 = arith.constant 0 : index
    %52 = vector.load %arg13[%c0_36, %c0_37, %c0_38] : memref<2x32x32xf32, #tpu.memory_space<vmem>>, vector<1x32x32xf32>
    %53 = vector.shape_cast %52 : vector<1x32x32xf32> to vector<32x32xf32>
    %c0_39 = arith.constant 0 : index
    %c0_40 = arith.constant 0 : index
    %c0_41 = arith.constant 0 : index
    %54 = vector.load %arg14[%c0_39, %c0_40, %c0_41] : memref<2x1x32xf32, #tpu.memory_space<vmem>>, vector<1x1x32xf32>
    %55 = vector.shape_cast %54 : vector<1x1x32xf32> to vector<1x32xf32>
    %cst_42 = arith.constant dense<0.000000e+00> : vector<16x32xf32>
    %56 = tpu.matmul %33, %53, %cst_42 {dimension_numbers = #tpu.dot_dimension_numbers<[1], [0], [0], [1], [0, 0, 1, 1], [], []>} : vector<16x32xf32>, vector<32x32xf32>, vector<16x32xf32> -> vector<16x32xf32>
    %57 = vector.broadcast %55 : vector<1x32xf32> to vector<16x32xf32>
    %58 = arith.addf %56, %57 : vector<16x32xf32>
    %cst_43 = arith.constant 0.000000e+00 : f32
    %59 = vector.broadcast %cst_43 : f32 to vector<16x32xf32>
    %c0_i32 = arith.constant 0 : i32
    %60 = vector.broadcast %c0_i32 : i32 to vector<1x32xi32>
    %61 = arith.cmpi sge, %35, %60 : vector<1x32xi32>
    %c8_i32 = arith.constant 8 : i32
    %62 = vector.broadcast %c8_i32 : i32 to vector<1x32xi32>
    %63 = arith.cmpi slt, %35, %62 : vector<1x32xi32>
    %64 = arith.andi %61, %63 : vector<1x32xi1>
    %65 = arith.extui %64 : vector<1x32xi1> to vector<1x32xi32>
    %66 = arith.sitofp %65 : vector<1x32xi32> to vector<1x32xf32>
    %67 = vector.broadcast %66 : vector<1x32xf32> to vector<16x32xf32>
    %68 = arith.mulf %44, %67 : vector<16x32xf32>
    %cst_44 = arith.constant dense<0.000000e+00> : vector<16x16xf32>
    %69 = tpu.matmul %68, %51, %cst_44 {dimension_numbers = #tpu.dot_dimension_numbers<[1], [1], [0], [0], [0, 0, 1, 0], [], []>} : vector<16x32xf32>, vector<16x32xf32>, vector<16x16xf32> -> vector<16x16xf32>
    %70 = arith.addf %69, %34 : vector<16x16xf32>
    %cst_45 = arith.constant dense<0xFF800000> : vector<16xf32>
    %71 = vector.multi_reduction <maximumf>, %70, %cst_45 [1] : vector<16x16xf32> to vector<16xf32>
    %72 = vector.shape_cast %71 : vector<16xf32> to vector<16x1xf32>
    %73 = vector.broadcast %72 : vector<16x1xf32> to vector<16x16xf32>
    %74 = arith.subf %70, %73 : vector<16x16xf32>
    %75 = math.exp %74 : vector<16x16xf32>
    %cst_46 = arith.constant dense<0.000000e+00> : vector<16xf32>
    %76 = vector.multi_reduction <add>, %75, %cst_46 [1] : vector<16x16xf32> to vector<16xf32>
    %77 = vector.shape_cast %76 : vector<16xf32> to vector<16x1xf32>
    %78 = tpu.reciprocal %77 {approx = true} : vector<16x1xf32> -> vector<16x1xf32>
    %79 = vector.broadcast %78 : vector<16x1xf32> to vector<16x16xf32>
    %80 = arith.mulf %75, %79 : vector<16x16xf32>
    %81 = vector.broadcast %66 : vector<1x32xf32> to vector<16x32xf32>
    %82 = arith.mulf %58, %81 : vector<16x32xf32>
    %cst_47 = arith.constant dense<0.000000e+00> : vector<16x32xf32>
    %83 = tpu.matmul %80, %82, %cst_47 {dimension_numbers = #tpu.dot_dimension_numbers<[1], [0], [0], [1], [0, 0, 1, 1], [], []>} : vector<16x16xf32>, vector<16x32xf32>, vector<16x32xf32> -> vector<16x32xf32>
    %84 = arith.addf %59, %83 : vector<16x32xf32>
    %c8_i32_48 = arith.constant 8 : i32
    %85 = vector.broadcast %c8_i32_48 : i32 to vector<1x32xi32>
    %86 = arith.cmpi sge, %35, %85 : vector<1x32xi32>
    %c16_i32 = arith.constant 16 : i32
    %87 = vector.broadcast %c16_i32 : i32 to vector<1x32xi32>
    %88 = arith.cmpi slt, %35, %87 : vector<1x32xi32>
    %89 = arith.andi %86, %88 : vector<1x32xi1>
    %90 = arith.extui %89 : vector<1x32xi1> to vector<1x32xi32>
    %91 = arith.sitofp %90 : vector<1x32xi32> to vector<1x32xf32>
    %92 = vector.broadcast %91 : vector<1x32xf32> to vector<16x32xf32>
    %93 = arith.mulf %44, %92 : vector<16x32xf32>
    %cst_49 = arith.constant dense<0.000000e+00> : vector<16x16xf32>
    %94 = tpu.matmul %93, %51, %cst_49 {dimension_numbers = #tpu.dot_dimension_numbers<[1], [1], [0], [0], [0, 0, 1, 0], [], []>} : vector<16x32xf32>, vector<16x32xf32>, vector<16x16xf32> -> vector<16x16xf32>
    %95 = arith.addf %94, %34 : vector<16x16xf32>
    %cst_50 = arith.constant dense<0xFF800000> : vector<16xf32>
    %96 = vector.multi_reduction <maximumf>, %95, %cst_50 [1] : vector<16x16xf32> to vector<16xf32>
    %97 = vector.shape_cast %96 : vector<16xf32> to vector<16x1xf32>
    %98 = vector.broadcast %97 : vector<16x1xf32> to vector<16x16xf32>
    %99 = arith.subf %95, %98 : vector<16x16xf32>
    %100 = math.exp %99 : vector<16x16xf32>
    %cst_51 = arith.constant dense<0.000000e+00> : vector<16xf32>
    %101 = vector.multi_reduction <add>, %100, %cst_51 [1] : vector<16x16xf32> to vector<16xf32>
    %102 = vector.shape_cast %101 : vector<16xf32> to vector<16x1xf32>
    %103 = tpu.reciprocal %102 {approx = true} : vector<16x1xf32> -> vector<16x1xf32>
    %104 = vector.broadcast %103 : vector<16x1xf32> to vector<16x16xf32>
    %105 = arith.mulf %100, %104 : vector<16x16xf32>
    %106 = vector.broadcast %91 : vector<1x32xf32> to vector<16x32xf32>
    %107 = arith.mulf %58, %106 : vector<16x32xf32>
    %cst_52 = arith.constant dense<0.000000e+00> : vector<16x32xf32>
    %108 = tpu.matmul %105, %107, %cst_52 {dimension_numbers = #tpu.dot_dimension_numbers<[1], [0], [0], [1], [0, 0, 1, 1], [], []>} : vector<16x16xf32>, vector<16x32xf32>, vector<16x32xf32> -> vector<16x32xf32>
    %109 = arith.addf %84, %108 : vector<16x32xf32>
    %c16_i32_53 = arith.constant 16 : i32
    %110 = vector.broadcast %c16_i32_53 : i32 to vector<1x32xi32>
    %111 = arith.cmpi sge, %35, %110 : vector<1x32xi32>
    %c24_i32 = arith.constant 24 : i32
    %112 = vector.broadcast %c24_i32 : i32 to vector<1x32xi32>
    %113 = arith.cmpi slt, %35, %112 : vector<1x32xi32>
    %114 = arith.andi %111, %113 : vector<1x32xi1>
    %115 = arith.extui %114 : vector<1x32xi1> to vector<1x32xi32>
    %116 = arith.sitofp %115 : vector<1x32xi32> to vector<1x32xf32>
    %117 = vector.broadcast %116 : vector<1x32xf32> to vector<16x32xf32>
    %118 = arith.mulf %44, %117 : vector<16x32xf32>
    %cst_54 = arith.constant dense<0.000000e+00> : vector<16x16xf32>
    %119 = tpu.matmul %118, %51, %cst_54 {dimension_numbers = #tpu.dot_dimension_numbers<[1], [1], [0], [0], [0, 0, 1, 0], [], []>} : vector<16x32xf32>, vector<16x32xf32>, vector<16x16xf32> -> vector<16x16xf32>
    %120 = arith.addf %119, %34 : vector<16x16xf32>
    %cst_55 = arith.constant dense<0xFF800000> : vector<16xf32>
    %121 = vector.multi_reduction <maximumf>, %120, %cst_55 [1] : vector<16x16xf32> to vector<16xf32>
    %122 = vector.shape_cast %121 : vector<16xf32> to vector<16x1xf32>
    %123 = vector.broadcast %122 : vector<16x1xf32> to vector<16x16xf32>
    %124 = arith.subf %120, %123 : vector<16x16xf32>
    %125 = math.exp %124 : vector<16x16xf32>
    %cst_56 = arith.constant dense<0.000000e+00> : vector<16xf32>
    %126 = vector.multi_reduction <add>, %125, %cst_56 [1] : vector<16x16xf32> to vector<16xf32>
    %127 = vector.shape_cast %126 : vector<16xf32> to vector<16x1xf32>
    %128 = tpu.reciprocal %127 {approx = true} : vector<16x1xf32> -> vector<16x1xf32>
    %129 = vector.broadcast %128 : vector<16x1xf32> to vector<16x16xf32>
    %130 = arith.mulf %125, %129 : vector<16x16xf32>
    %131 = vector.broadcast %116 : vector<1x32xf32> to vector<16x32xf32>
    %132 = arith.mulf %58, %131 : vector<16x32xf32>
    %cst_57 = arith.constant dense<0.000000e+00> : vector<16x32xf32>
    %133 = tpu.matmul %130, %132, %cst_57 {dimension_numbers = #tpu.dot_dimension_numbers<[1], [0], [0], [1], [0, 0, 1, 1], [], []>} : vector<16x16xf32>, vector<16x32xf32>, vector<16x32xf32> -> vector<16x32xf32>
    %134 = arith.addf %109, %133 : vector<16x32xf32>
    %c24_i32_58 = arith.constant 24 : i32
    %135 = vector.broadcast %c24_i32_58 : i32 to vector<1x32xi32>
    %136 = arith.cmpi sge, %35, %135 : vector<1x32xi32>
    %c32_i32 = arith.constant 32 : i32
    %137 = vector.broadcast %c32_i32 : i32 to vector<1x32xi32>
    %138 = arith.cmpi slt, %35, %137 : vector<1x32xi32>
    %139 = arith.andi %136, %138 : vector<1x32xi1>
    %140 = arith.extui %139 : vector<1x32xi1> to vector<1x32xi32>
    %141 = arith.sitofp %140 : vector<1x32xi32> to vector<1x32xf32>
    %142 = vector.broadcast %141 : vector<1x32xf32> to vector<16x32xf32>
    %143 = arith.mulf %44, %142 : vector<16x32xf32>
    %cst_59 = arith.constant dense<0.000000e+00> : vector<16x16xf32>
    %144 = tpu.matmul %143, %51, %cst_59 {dimension_numbers = #tpu.dot_dimension_numbers<[1], [1], [0], [0], [0, 0, 1, 0], [], []>} : vector<16x32xf32>, vector<16x32xf32>, vector<16x16xf32> -> vector<16x16xf32>
    %145 = arith.addf %144, %34 : vector<16x16xf32>
    %cst_60 = arith.constant dense<0xFF800000> : vector<16xf32>
    %146 = vector.multi_reduction <maximumf>, %145, %cst_60 [1] : vector<16x16xf32> to vector<16xf32>
    %147 = vector.shape_cast %146 : vector<16xf32> to vector<16x1xf32>
    %148 = vector.broadcast %147 : vector<16x1xf32> to vector<16x16xf32>
    %149 = arith.subf %145, %148 : vector<16x16xf32>
    %150 = math.exp %149 : vector<16x16xf32>
    %cst_61 = arith.constant dense<0.000000e+00> : vector<16xf32>
    %151 = vector.multi_reduction <add>, %150, %cst_61 [1] : vector<16x16xf32> to vector<16xf32>
    %152 = vector.shape_cast %151 : vector<16xf32> to vector<16x1xf32>
    %153 = tpu.reciprocal %152 {approx = true} : vector<16x1xf32> -> vector<16x1xf32>
    %154 = vector.broadcast %153 : vector<16x1xf32> to vector<16x16xf32>
    %155 = arith.mulf %150, %154 : vector<16x16xf32>
    %156 = vector.broadcast %141 : vector<1x32xf32> to vector<16x32xf32>
    %157 = arith.mulf %58, %156 : vector<16x32xf32>
    %cst_62 = arith.constant dense<0.000000e+00> : vector<16x32xf32>
    %158 = tpu.matmul %155, %157, %cst_62 {dimension_numbers = #tpu.dot_dimension_numbers<[1], [0], [0], [1], [0, 0, 1, 1], [], []>} : vector<16x16xf32>, vector<16x32xf32>, vector<16x32xf32> -> vector<16x32xf32>
    %159 = arith.addf %134, %158 : vector<16x32xf32>
    %c0_63 = arith.constant 0 : index
    %c0_64 = arith.constant 0 : index
    %c0_65 = arith.constant 0 : index
    %160 = vector.load %arg15[%c0_63, %c0_64, %c0_65] : memref<2x32x32xf32, #tpu.memory_space<vmem>>, vector<1x32x32xf32>
    %161 = vector.shape_cast %160 : vector<1x32x32xf32> to vector<32x32xf32>
    %c0_66 = arith.constant 0 : index
    %c0_67 = arith.constant 0 : index
    %c0_68 = arith.constant 0 : index
    %162 = vector.load %arg16[%c0_66, %c0_67, %c0_68] : memref<2x1x32xf32, #tpu.memory_space<vmem>>, vector<1x1x32xf32>
    %163 = vector.shape_cast %162 : vector<1x1x32xf32> to vector<1x32xf32>
    %cst_69 = arith.constant dense<0.000000e+00> : vector<16x32xf32>
    %164 = tpu.matmul %159, %161, %cst_69 {dimension_numbers = #tpu.dot_dimension_numbers<[1], [0], [0], [1], [0, 0, 1, 1], [], []>} : vector<16x32xf32>, vector<32x32xf32>, vector<16x32xf32> -> vector<16x32xf32>
    %165 = vector.broadcast %163 : vector<1x32xf32> to vector<16x32xf32>
    %166 = arith.addf %164, %165 : vector<16x32xf32>
    %167 = arith.addf %33, %166 : vector<16x32xf32>
    %c0_70 = arith.constant 0 : index
    %c0_71 = arith.constant 0 : index
    %c0_72 = arith.constant 0 : index
    %168 = vector.load %arg17[%c0_70, %c0_71, %c0_72] : memref<2x1x32xf32, #tpu.memory_space<vmem>>, vector<1x1x32xf32>
    %169 = vector.shape_cast %168 : vector<1x1x32xf32> to vector<1x32xf32>
    %c0_73 = arith.constant 0 : index
    %c0_74 = arith.constant 0 : index
    %c0_75 = arith.constant 0 : index
    %170 = vector.load %arg18[%c0_73, %c0_74, %c0_75] : memref<2x1x32xf32, #tpu.memory_space<vmem>>, vector<1x1x32xf32>
    %171 = vector.shape_cast %170 : vector<1x1x32xf32> to vector<1x32xf32>
    %cst_76 = arith.constant dense<0.000000e+00> : vector<16xf32>
    %172 = vector.multi_reduction <add>, %167, %cst_76 [1] : vector<16x32xf32> to vector<16xf32>
    %173 = vector.shape_cast %172 : vector<16xf32> to vector<16x1xf32>
    %cst_77 = arith.constant 3.200000e+01 : f32
    %174 = vector.broadcast %cst_77 : f32 to vector<16x1xf32>
    %175 = arith.divf %173, %174 : vector<16x1xf32>
    %176 = vector.broadcast %175 : vector<16x1xf32> to vector<16x32xf32>
    %177 = arith.subf %167, %176 : vector<16x32xf32>
    %178 = arith.mulf %177, %177 : vector<16x32xf32>
    %cst_78 = arith.constant dense<0.000000e+00> : vector<16xf32>
    %179 = vector.multi_reduction <add>, %178, %cst_78 [1] : vector<16x32xf32> to vector<16xf32>
    %180 = vector.shape_cast %179 : vector<16xf32> to vector<16x1xf32>
    %cst_79 = arith.constant 3.200000e+01 : f32
    %181 = vector.broadcast %cst_79 : f32 to vector<16x1xf32>
    %182 = arith.divf %180, %181 : vector<16x1xf32>
    %183 = vector.broadcast %175 : vector<16x1xf32> to vector<16x32xf32>
    %184 = arith.subf %167, %183 : vector<16x32xf32>
    %cst_80 = arith.constant 9.99999996E-13 : f32
    %185 = vector.broadcast %cst_80 : f32 to vector<16x1xf32>
    %186 = arith.addf %182, %185 : vector<16x1xf32>
    %187 = math.rsqrt %186 : vector<16x1xf32>
    %188 = vector.broadcast %187 : vector<16x1xf32> to vector<16x32xf32>
    %189 = arith.mulf %184, %188 : vector<16x32xf32>
    %190 = vector.broadcast %169 : vector<1x32xf32> to vector<16x32xf32>
    %191 = arith.mulf %189, %190 : vector<16x32xf32>
    %192 = vector.broadcast %171 : vector<1x32xf32> to vector<16x32xf32>
    %193 = arith.addf %191, %192 : vector<16x32xf32>
    %c0_81 = arith.constant 0 : index
    %c0_82 = arith.constant 0 : index
    %c0_83 = arith.constant 0 : index
    %194 = vector.load %arg19[%c0_81, %c0_82, %c0_83] : memref<2x32x64xf32, #tpu.memory_space<vmem>>, vector<1x32x64xf32>
    %195 = vector.shape_cast %194 : vector<1x32x64xf32> to vector<32x64xf32>
    %c0_84 = arith.constant 0 : index
    %c0_85 = arith.constant 0 : index
    %c0_86 = arith.constant 0 : index
    %196 = vector.load %arg20[%c0_84, %c0_85, %c0_86] : memref<2x1x64xf32, #tpu.memory_space<vmem>>, vector<1x1x64xf32>
    %197 = vector.shape_cast %196 : vector<1x1x64xf32> to vector<1x64xf32>
    %cst_87 = arith.constant dense<0.000000e+00> : vector<16x64xf32>
    %198 = tpu.matmul %193, %195, %cst_87 {dimension_numbers = #tpu.dot_dimension_numbers<[1], [0], [0], [1], [0, 0, 1, 1], [], []>} : vector<16x32xf32>, vector<32x64xf32>, vector<16x64xf32> -> vector<16x64xf32>
    %199 = vector.broadcast %197 : vector<1x64xf32> to vector<16x64xf32>
    %200 = arith.addf %198, %199 : vector<16x64xf32>
    %cst_88 = arith.constant 5.000000e-01 : f32
    %201 = vector.broadcast %cst_88 : f32 to vector<16x64xf32>
    %202 = arith.mulf %201, %200 : vector<16x64xf32>
    %cst_89 = arith.constant 4.471500e-02 : f32
    %203 = vector.broadcast %cst_89 : f32 to vector<16x64xf32>
    %204 = arith.mulf %203, %200 : vector<16x64xf32>
    %205 = arith.mulf %204, %200 : vector<16x64xf32>
    %206 = arith.mulf %205, %200 : vector<16x64xf32>
    %207 = arith.addf %200, %206 : vector<16x64xf32>
    %cst_90 = arith.constant 0.797884583 : f32
    %208 = vector.broadcast %cst_90 : f32 to vector<16x64xf32>
    %209 = arith.mulf %208, %207 : vector<16x64xf32>
    %210 = math.tanh %209 : vector<16x64xf32>
    %cst_91 = arith.constant 1.000000e+00 : f32
    %211 = vector.broadcast %cst_91 : f32 to vector<16x64xf32>
    %212 = arith.addf %211, %210 : vector<16x64xf32>
    %213 = arith.mulf %202, %212 : vector<16x64xf32>
    %c0_92 = arith.constant 0 : index
    %c0_93 = arith.constant 0 : index
    %c0_94 = arith.constant 0 : index
    %214 = vector.load %arg21[%c0_92, %c0_93, %c0_94] : memref<2x64x32xf32, #tpu.memory_space<vmem>>, vector<1x64x32xf32>
    %215 = vector.shape_cast %214 : vector<1x64x32xf32> to vector<64x32xf32>
    %c0_95 = arith.constant 0 : index
    %c0_96 = arith.constant 0 : index
    %c0_97 = arith.constant 0 : index
    %216 = vector.load %arg22[%c0_95, %c0_96, %c0_97] : memref<2x1x32xf32, #tpu.memory_space<vmem>>, vector<1x1x32xf32>
    %217 = vector.shape_cast %216 : vector<1x1x32xf32> to vector<1x32xf32>
    %cst_98 = arith.constant dense<0.000000e+00> : vector<16x32xf32>
    %218 = tpu.matmul %213, %215, %cst_98 {dimension_numbers = #tpu.dot_dimension_numbers<[1], [0], [0], [1], [0, 0, 1, 1], [], []>} : vector<16x64xf32>, vector<64x32xf32>, vector<16x32xf32> -> vector<16x32xf32>
    %219 = vector.broadcast %217 : vector<1x32xf32> to vector<16x32xf32>
    %220 = arith.addf %218, %219 : vector<16x32xf32>
    %221 = arith.addf %193, %220 : vector<16x32xf32>
    %c0_99 = arith.constant 0 : index
    %c0_100 = arith.constant 0 : index
    %c0_101 = arith.constant 0 : index
    %222 = vector.load %arg23[%c0_99, %c0_100, %c0_101] : memref<2x1x32xf32, #tpu.memory_space<vmem>>, vector<1x1x32xf32>
    %223 = vector.shape_cast %222 : vector<1x1x32xf32> to vector<1x32xf32>
    %c0_102 = arith.constant 0 : index
    %c0_103 = arith.constant 0 : index
    %c0_104 = arith.constant 0 : index
    %224 = vector.load %arg24[%c0_102, %c0_103, %c0_104] : memref<2x1x32xf32, #tpu.memory_space<vmem>>, vector<1x1x32xf32>
    %225 = vector.shape_cast %224 : vector<1x1x32xf32> to vector<1x32xf32>
    %cst_105 = arith.constant dense<0.000000e+00> : vector<16xf32>
    %226 = vector.multi_reduction <add>, %221, %cst_105 [1] : vector<16x32xf32> to vector<16xf32>
    %227 = vector.shape_cast %226 : vector<16xf32> to vector<16x1xf32>
    %cst_106 = arith.constant 3.200000e+01 : f32
    %228 = vector.broadcast %cst_106 : f32 to vector<16x1xf32>
    %229 = arith.divf %227, %228 : vector<16x1xf32>
    %230 = vector.broadcast %229 : vector<16x1xf32> to vector<16x32xf32>
    %231 = arith.subf %221, %230 : vector<16x32xf32>
    %232 = arith.mulf %231, %231 : vector<16x32xf32>
    %cst_107 = arith.constant dense<0.000000e+00> : vector<16xf32>
    %233 = vector.multi_reduction <add>, %232, %cst_107 [1] : vector<16x32xf32> to vector<16xf32>
    %234 = vector.shape_cast %233 : vector<16xf32> to vector<16x1xf32>
    %cst_108 = arith.constant 3.200000e+01 : f32
    %235 = vector.broadcast %cst_108 : f32 to vector<16x1xf32>
    %236 = arith.divf %234, %235 : vector<16x1xf32>
    %237 = vector.broadcast %229 : vector<16x1xf32> to vector<16x32xf32>
    %238 = arith.subf %221, %237 : vector<16x32xf32>
    %cst_109 = arith.constant 9.99999996E-13 : f32
    %239 = vector.broadcast %cst_109 : f32 to vector<16x1xf32>
    %240 = arith.addf %236, %239 : vector<16x1xf32>
    %241 = math.rsqrt %240 : vector<16x1xf32>
    %242 = vector.broadcast %241 : vector<16x1xf32> to vector<16x32xf32>
    %243 = arith.mulf %238, %242 : vector<16x32xf32>
    %244 = vector.broadcast %223 : vector<1x32xf32> to vector<16x32xf32>
    %245 = arith.mulf %243, %244 : vector<16x32xf32>
    %246 = vector.broadcast %225 : vector<1x32xf32> to vector<16x32xf32>
    %247 = arith.addf %245, %246 : vector<16x32xf32>
    %c1 = arith.constant 1 : index
    %c0_110 = arith.constant 0 : index
    %c0_111 = arith.constant 0 : index
    %248 = vector.load %arg9[%c1, %c0_110, %c0_111] : memref<2x32x32xf32, #tpu.memory_space<vmem>>, vector<1x32x32xf32>
    %249 = vector.shape_cast %248 : vector<1x32x32xf32> to vector<32x32xf32>
    %c1_112 = arith.constant 1 : index
    %c0_113 = arith.constant 0 : index
    %c0_114 = arith.constant 0 : index
    %250 = vector.load %arg10[%c1_112, %c0_113, %c0_114] : memref<2x1x32xf32, #tpu.memory_space<vmem>>, vector<1x1x32xf32>
    %251 = vector.shape_cast %250 : vector<1x1x32xf32> to vector<1x32xf32>
    %cst_115 = arith.constant dense<0.000000e+00> : vector<16x32xf32>
    %252 = tpu.matmul %247, %249, %cst_115 {dimension_numbers = #tpu.dot_dimension_numbers<[1], [0], [0], [1], [0, 0, 1, 1], [], []>} : vector<16x32xf32>, vector<32x32xf32>, vector<16x32xf32> -> vector<16x32xf32>
    %253 = vector.broadcast %251 : vector<1x32xf32> to vector<16x32xf32>
    %254 = arith.addf %252, %253 : vector<16x32xf32>
    %cst_116 = arith.constant 0.353553385 : f32
    %255 = vector.broadcast %cst_116 : f32 to vector<16x32xf32>
    %256 = arith.mulf %254, %255 : vector<16x32xf32>
    %c1_117 = arith.constant 1 : index
    %c0_118 = arith.constant 0 : index
    %c0_119 = arith.constant 0 : index
    %257 = vector.load %arg11[%c1_117, %c0_118, %c0_119] : memref<2x32x32xf32, #tpu.memory_space<vmem>>, vector<1x32x32xf32>
    %258 = vector.shape_cast %257 : vector<1x32x32xf32> to vector<32x32xf32>
    %c1_120 = arith.constant 1 : index
    %c0_121 = arith.constant 0 : index
    %c0_122 = arith.constant 0 : index
    %259 = vector.load %arg12[%c1_120, %c0_121, %c0_122] : memref<2x1x32xf32, #tpu.memory_space<vmem>>, vector<1x1x32xf32>
    %260 = vector.shape_cast %259 : vector<1x1x32xf32> to vector<1x32xf32>
    %cst_123 = arith.constant dense<0.000000e+00> : vector<16x32xf32>
    %261 = tpu.matmul %247, %258, %cst_123 {dimension_numbers = #tpu.dot_dimension_numbers<[1], [0], [0], [1], [0, 0, 1, 1], [], []>} : vector<16x32xf32>, vector<32x32xf32>, vector<16x32xf32> -> vector<16x32xf32>
    %262 = vector.broadcast %260 : vector<1x32xf32> to vector<16x32xf32>
    %263 = arith.addf %261, %262 : vector<16x32xf32>
    %c1_124 = arith.constant 1 : index
    %c0_125 = arith.constant 0 : index
    %c0_126 = arith.constant 0 : index
    %264 = vector.load %arg13[%c1_124, %c0_125, %c0_126] : memref<2x32x32xf32, #tpu.memory_space<vmem>>, vector<1x32x32xf32>
    %265 = vector.shape_cast %264 : vector<1x32x32xf32> to vector<32x32xf32>
    %c1_127 = arith.constant 1 : index
    %c0_128 = arith.constant 0 : index
    %c0_129 = arith.constant 0 : index
    %266 = vector.load %arg14[%c1_127, %c0_128, %c0_129] : memref<2x1x32xf32, #tpu.memory_space<vmem>>, vector<1x1x32xf32>
    %267 = vector.shape_cast %266 : vector<1x1x32xf32> to vector<1x32xf32>
    %cst_130 = arith.constant dense<0.000000e+00> : vector<16x32xf32>
    %268 = tpu.matmul %247, %265, %cst_130 {dimension_numbers = #tpu.dot_dimension_numbers<[1], [0], [0], [1], [0, 0, 1, 1], [], []>} : vector<16x32xf32>, vector<32x32xf32>, vector<16x32xf32> -> vector<16x32xf32>
    %269 = vector.broadcast %267 : vector<1x32xf32> to vector<16x32xf32>
    %270 = arith.addf %268, %269 : vector<16x32xf32>
    %cst_131 = arith.constant 0.000000e+00 : f32
    %271 = vector.broadcast %cst_131 : f32 to vector<16x32xf32>
    %c0_i32_132 = arith.constant 0 : i32
    %272 = vector.broadcast %c0_i32_132 : i32 to vector<1x32xi32>
    %273 = arith.cmpi sge, %35, %272 : vector<1x32xi32>
    %c8_i32_133 = arith.constant 8 : i32
    %274 = vector.broadcast %c8_i32_133 : i32 to vector<1x32xi32>
    %275 = arith.cmpi slt, %35, %274 : vector<1x32xi32>
    %276 = arith.andi %273, %275 : vector<1x32xi1>
    %277 = arith.extui %276 : vector<1x32xi1> to vector<1x32xi32>
    %278 = arith.sitofp %277 : vector<1x32xi32> to vector<1x32xf32>
    %279 = vector.broadcast %278 : vector<1x32xf32> to vector<16x32xf32>
    %280 = arith.mulf %256, %279 : vector<16x32xf32>
    %cst_134 = arith.constant dense<0.000000e+00> : vector<16x16xf32>
    %281 = tpu.matmul %280, %263, %cst_134 {dimension_numbers = #tpu.dot_dimension_numbers<[1], [1], [0], [0], [0, 0, 1, 0], [], []>} : vector<16x32xf32>, vector<16x32xf32>, vector<16x16xf32> -> vector<16x16xf32>
    %282 = arith.addf %281, %34 : vector<16x16xf32>
    %cst_135 = arith.constant dense<0xFF800000> : vector<16xf32>
    %283 = vector.multi_reduction <maximumf>, %282, %cst_135 [1] : vector<16x16xf32> to vector<16xf32>
    %284 = vector.shape_cast %283 : vector<16xf32> to vector<16x1xf32>
    %285 = vector.broadcast %284 : vector<16x1xf32> to vector<16x16xf32>
    %286 = arith.subf %282, %285 : vector<16x16xf32>
    %287 = math.exp %286 : vector<16x16xf32>
    %cst_136 = arith.constant dense<0.000000e+00> : vector<16xf32>
    %288 = vector.multi_reduction <add>, %287, %cst_136 [1] : vector<16x16xf32> to vector<16xf32>
    %289 = vector.shape_cast %288 : vector<16xf32> to vector<16x1xf32>
    %290 = tpu.reciprocal %289 {approx = true} : vector<16x1xf32> -> vector<16x1xf32>
    %291 = vector.broadcast %290 : vector<16x1xf32> to vector<16x16xf32>
    %292 = arith.mulf %287, %291 : vector<16x16xf32>
    %293 = vector.broadcast %278 : vector<1x32xf32> to vector<16x32xf32>
    %294 = arith.mulf %270, %293 : vector<16x32xf32>
    %cst_137 = arith.constant dense<0.000000e+00> : vector<16x32xf32>
    %295 = tpu.matmul %292, %294, %cst_137 {dimension_numbers = #tpu.dot_dimension_numbers<[1], [0], [0], [1], [0, 0, 1, 1], [], []>} : vector<16x16xf32>, vector<16x32xf32>, vector<16x32xf32> -> vector<16x32xf32>
    %296 = arith.addf %271, %295 : vector<16x32xf32>
    %c8_i32_138 = arith.constant 8 : i32
    %297 = vector.broadcast %c8_i32_138 : i32 to vector<1x32xi32>
    %298 = arith.cmpi sge, %35, %297 : vector<1x32xi32>
    %c16_i32_139 = arith.constant 16 : i32
    %299 = vector.broadcast %c16_i32_139 : i32 to vector<1x32xi32>
    %300 = arith.cmpi slt, %35, %299 : vector<1x32xi32>
    %301 = arith.andi %298, %300 : vector<1x32xi1>
    %302 = arith.extui %301 : vector<1x32xi1> to vector<1x32xi32>
    %303 = arith.sitofp %302 : vector<1x32xi32> to vector<1x32xf32>
    %304 = vector.broadcast %303 : vector<1x32xf32> to vector<16x32xf32>
    %305 = arith.mulf %256, %304 : vector<16x32xf32>
    %cst_140 = arith.constant dense<0.000000e+00> : vector<16x16xf32>
    %306 = tpu.matmul %305, %263, %cst_140 {dimension_numbers = #tpu.dot_dimension_numbers<[1], [1], [0], [0], [0, 0, 1, 0], [], []>} : vector<16x32xf32>, vector<16x32xf32>, vector<16x16xf32> -> vector<16x16xf32>
    %307 = arith.addf %306, %34 : vector<16x16xf32>
    %cst_141 = arith.constant dense<0xFF800000> : vector<16xf32>
    %308 = vector.multi_reduction <maximumf>, %307, %cst_141 [1] : vector<16x16xf32> to vector<16xf32>
    %309 = vector.shape_cast %308 : vector<16xf32> to vector<16x1xf32>
    %310 = vector.broadcast %309 : vector<16x1xf32> to vector<16x16xf32>
    %311 = arith.subf %307, %310 : vector<16x16xf32>
    %312 = math.exp %311 : vector<16x16xf32>
    %cst_142 = arith.constant dense<0.000000e+00> : vector<16xf32>
    %313 = vector.multi_reduction <add>, %312, %cst_142 [1] : vector<16x16xf32> to vector<16xf32>
    %314 = vector.shape_cast %313 : vector<16xf32> to vector<16x1xf32>
    %315 = tpu.reciprocal %314 {approx = true} : vector<16x1xf32> -> vector<16x1xf32>
    %316 = vector.broadcast %315 : vector<16x1xf32> to vector<16x16xf32>
    %317 = arith.mulf %312, %316 : vector<16x16xf32>
    %318 = vector.broadcast %303 : vector<1x32xf32> to vector<16x32xf32>
    %319 = arith.mulf %270, %318 : vector<16x32xf32>
    %cst_143 = arith.constant dense<0.000000e+00> : vector<16x32xf32>
    %320 = tpu.matmul %317, %319, %cst_143 {dimension_numbers = #tpu.dot_dimension_numbers<[1], [0], [0], [1], [0, 0, 1, 1], [], []>} : vector<16x16xf32>, vector<16x32xf32>, vector<16x32xf32> -> vector<16x32xf32>
    %321 = arith.addf %296, %320 : vector<16x32xf32>
    %c16_i32_144 = arith.constant 16 : i32
    %322 = vector.broadcast %c16_i32_144 : i32 to vector<1x32xi32>
    %323 = arith.cmpi sge, %35, %322 : vector<1x32xi32>
    %c24_i32_145 = arith.constant 24 : i32
    %324 = vector.broadcast %c24_i32_145 : i32 to vector<1x32xi32>
    %325 = arith.cmpi slt, %35, %324 : vector<1x32xi32>
    %326 = arith.andi %323, %325 : vector<1x32xi1>
    %327 = arith.extui %326 : vector<1x32xi1> to vector<1x32xi32>
    %328 = arith.sitofp %327 : vector<1x32xi32> to vector<1x32xf32>
    %329 = vector.broadcast %328 : vector<1x32xf32> to vector<16x32xf32>
    %330 = arith.mulf %256, %329 : vector<16x32xf32>
    %cst_146 = arith.constant dense<0.000000e+00> : vector<16x16xf32>
    %331 = tpu.matmul %330, %263, %cst_146 {dimension_numbers = #tpu.dot_dimension_numbers<[1], [1], [0], [0], [0, 0, 1, 0], [], []>} : vector<16x32xf32>, vector<16x32xf32>, vector<16x16xf32> -> vector<16x16xf32>
    %332 = arith.addf %331, %34 : vector<16x16xf32>
    %cst_147 = arith.constant dense<0xFF800000> : vector<16xf32>
    %333 = vector.multi_reduction <maximumf>, %332, %cst_147 [1] : vector<16x16xf32> to vector<16xf32>
    %334 = vector.shape_cast %333 : vector<16xf32> to vector<16x1xf32>
    %335 = vector.broadcast %334 : vector<16x1xf32> to vector<16x16xf32>
    %336 = arith.subf %332, %335 : vector<16x16xf32>
    %337 = math.exp %336 : vector<16x16xf32>
    %cst_148 = arith.constant dense<0.000000e+00> : vector<16xf32>
    %338 = vector.multi_reduction <add>, %337, %cst_148 [1] : vector<16x16xf32> to vector<16xf32>
    %339 = vector.shape_cast %338 : vector<16xf32> to vector<16x1xf32>
    %340 = tpu.reciprocal %339 {approx = true} : vector<16x1xf32> -> vector<16x1xf32>
    %341 = vector.broadcast %340 : vector<16x1xf32> to vector<16x16xf32>
    %342 = arith.mulf %337, %341 : vector<16x16xf32>
    %343 = vector.broadcast %328 : vector<1x32xf32> to vector<16x32xf32>
    %344 = arith.mulf %270, %343 : vector<16x32xf32>
    %cst_149 = arith.constant dense<0.000000e+00> : vector<16x32xf32>
    %345 = tpu.matmul %342, %344, %cst_149 {dimension_numbers = #tpu.dot_dimension_numbers<[1], [0], [0], [1], [0, 0, 1, 1], [], []>} : vector<16x16xf32>, vector<16x32xf32>, vector<16x32xf32> -> vector<16x32xf32>
    %346 = arith.addf %321, %345 : vector<16x32xf32>
    %c24_i32_150 = arith.constant 24 : i32
    %347 = vector.broadcast %c24_i32_150 : i32 to vector<1x32xi32>
    %348 = arith.cmpi sge, %35, %347 : vector<1x32xi32>
    %c32_i32_151 = arith.constant 32 : i32
    %349 = vector.broadcast %c32_i32_151 : i32 to vector<1x32xi32>
    %350 = arith.cmpi slt, %35, %349 : vector<1x32xi32>
    %351 = arith.andi %348, %350 : vector<1x32xi1>
    %352 = arith.extui %351 : vector<1x32xi1> to vector<1x32xi32>
    %353 = arith.sitofp %352 : vector<1x32xi32> to vector<1x32xf32>
    %354 = vector.broadcast %353 : vector<1x32xf32> to vector<16x32xf32>
    %355 = arith.mulf %256, %354 : vector<16x32xf32>
    %cst_152 = arith.constant dense<0.000000e+00> : vector<16x16xf32>
    %356 = tpu.matmul %355, %263, %cst_152 {dimension_numbers = #tpu.dot_dimension_numbers<[1], [1], [0], [0], [0, 0, 1, 0], [], []>} : vector<16x32xf32>, vector<16x32xf32>, vector<16x16xf32> -> vector<16x16xf32>
    %357 = arith.addf %356, %34 : vector<16x16xf32>
    %cst_153 = arith.constant dense<0xFF800000> : vector<16xf32>
    %358 = vector.multi_reduction <maximumf>, %357, %cst_153 [1] : vector<16x16xf32> to vector<16xf32>
    %359 = vector.shape_cast %358 : vector<16xf32> to vector<16x1xf32>
    %360 = vector.broadcast %359 : vector<16x1xf32> to vector<16x16xf32>
    %361 = arith.subf %357, %360 : vector<16x16xf32>
    %362 = math.exp %361 : vector<16x16xf32>
    %cst_154 = arith.constant dense<0.000000e+00> : vector<16xf32>
    %363 = vector.multi_reduction <add>, %362, %cst_154 [1] : vector<16x16xf32> to vector<16xf32>
    %364 = vector.shape_cast %363 : vector<16xf32> to vector<16x1xf32>
    %365 = tpu.reciprocal %364 {approx = true} : vector<16x1xf32> -> vector<16x1xf32>
    %366 = vector.broadcast %365 : vector<16x1xf32> to vector<16x16xf32>
    %367 = arith.mulf %362, %366 : vector<16x16xf32>
    %368 = vector.broadcast %353 : vector<1x32xf32> to vector<16x32xf32>
    %369 = arith.mulf %270, %368 : vector<16x32xf32>
    %cst_155 = arith.constant dense<0.000000e+00> : vector<16x32xf32>
    %370 = tpu.matmul %367, %369, %cst_155 {dimension_numbers = #tpu.dot_dimension_numbers<[1], [0], [0], [1], [0, 0, 1, 1], [], []>} : vector<16x16xf32>, vector<16x32xf32>, vector<16x32xf32> -> vector<16x32xf32>
    %371 = arith.addf %346, %370 : vector<16x32xf32>
    %c1_156 = arith.constant 1 : index
    %c0_157 = arith.constant 0 : index
    %c0_158 = arith.constant 0 : index
    %372 = vector.load %arg15[%c1_156, %c0_157, %c0_158] : memref<2x32x32xf32, #tpu.memory_space<vmem>>, vector<1x32x32xf32>
    %373 = vector.shape_cast %372 : vector<1x32x32xf32> to vector<32x32xf32>
    %c1_159 = arith.constant 1 : index
    %c0_160 = arith.constant 0 : index
    %c0_161 = arith.constant 0 : index
    %374 = vector.load %arg16[%c1_159, %c0_160, %c0_161] : memref<2x1x32xf32, #tpu.memory_space<vmem>>, vector<1x1x32xf32>
    %375 = vector.shape_cast %374 : vector<1x1x32xf32> to vector<1x32xf32>
    %cst_162 = arith.constant dense<0.000000e+00> : vector<16x32xf32>
    %376 = tpu.matmul %371, %373, %cst_162 {dimension_numbers = #tpu.dot_dimension_numbers<[1], [0], [0], [1], [0, 0, 1, 1], [], []>} : vector<16x32xf32>, vector<32x32xf32>, vector<16x32xf32> -> vector<16x32xf32>
    %377 = vector.broadcast %375 : vector<1x32xf32> to vector<16x32xf32>
    %378 = arith.addf %376, %377 : vector<16x32xf32>
    %379 = arith.addf %247, %378 : vector<16x32xf32>
    %c1_163 = arith.constant 1 : index
    %c0_164 = arith.constant 0 : index
    %c0_165 = arith.constant 0 : index
    %380 = vector.load %arg17[%c1_163, %c0_164, %c0_165] : memref<2x1x32xf32, #tpu.memory_space<vmem>>, vector<1x1x32xf32>
    %381 = vector.shape_cast %380 : vector<1x1x32xf32> to vector<1x32xf32>
    %c1_166 = arith.constant 1 : index
    %c0_167 = arith.constant 0 : index
    %c0_168 = arith.constant 0 : index
    %382 = vector.load %arg18[%c1_166, %c0_167, %c0_168] : memref<2x1x32xf32, #tpu.memory_space<vmem>>, vector<1x1x32xf32>
    %383 = vector.shape_cast %382 : vector<1x1x32xf32> to vector<1x32xf32>
    %cst_169 = arith.constant dense<0.000000e+00> : vector<16xf32>
    %384 = vector.multi_reduction <add>, %379, %cst_169 [1] : vector<16x32xf32> to vector<16xf32>
    %385 = vector.shape_cast %384 : vector<16xf32> to vector<16x1xf32>
    %cst_170 = arith.constant 3.200000e+01 : f32
    %386 = vector.broadcast %cst_170 : f32 to vector<16x1xf32>
    %387 = arith.divf %385, %386 : vector<16x1xf32>
    %388 = vector.broadcast %387 : vector<16x1xf32> to vector<16x32xf32>
    %389 = arith.subf %379, %388 : vector<16x32xf32>
    %390 = arith.mulf %389, %389 : vector<16x32xf32>
    %cst_171 = arith.constant dense<0.000000e+00> : vector<16xf32>
    %391 = vector.multi_reduction <add>, %390, %cst_171 [1] : vector<16x32xf32> to vector<16xf32>
    %392 = vector.shape_cast %391 : vector<16xf32> to vector<16x1xf32>
    %cst_172 = arith.constant 3.200000e+01 : f32
    %393 = vector.broadcast %cst_172 : f32 to vector<16x1xf32>
    %394 = arith.divf %392, %393 : vector<16x1xf32>
    %395 = vector.broadcast %387 : vector<16x1xf32> to vector<16x32xf32>
    %396 = arith.subf %379, %395 : vector<16x32xf32>
    %cst_173 = arith.constant 9.99999996E-13 : f32
    %397 = vector.broadcast %cst_173 : f32 to vector<16x1xf32>
    %398 = arith.addf %394, %397 : vector<16x1xf32>
    %399 = math.rsqrt %398 : vector<16x1xf32>
    %400 = vector.broadcast %399 : vector<16x1xf32> to vector<16x32xf32>
    %401 = arith.mulf %396, %400 : vector<16x32xf32>
    %402 = vector.broadcast %381 : vector<1x32xf32> to vector<16x32xf32>
    %403 = arith.mulf %401, %402 : vector<16x32xf32>
    %404 = vector.broadcast %383 : vector<1x32xf32> to vector<16x32xf32>
    %405 = arith.addf %403, %404 : vector<16x32xf32>
    %c1_174 = arith.constant 1 : index
    %c0_175 = arith.constant 0 : index
    %c0_176 = arith.constant 0 : index
    %406 = vector.load %arg19[%c1_174, %c0_175, %c0_176] : memref<2x32x64xf32, #tpu.memory_space<vmem>>, vector<1x32x64xf32>
    %407 = vector.shape_cast %406 : vector<1x32x64xf32> to vector<32x64xf32>
    %c1_177 = arith.constant 1 : index
    %c0_178 = arith.constant 0 : index
    %c0_179 = arith.constant 0 : index
    %408 = vector.load %arg20[%c1_177, %c0_178, %c0_179] : memref<2x1x64xf32, #tpu.memory_space<vmem>>, vector<1x1x64xf32>
    %409 = vector.shape_cast %408 : vector<1x1x64xf32> to vector<1x64xf32>
    %cst_180 = arith.constant dense<0.000000e+00> : vector<16x64xf32>
    %410 = tpu.matmul %405, %407, %cst_180 {dimension_numbers = #tpu.dot_dimension_numbers<[1], [0], [0], [1], [0, 0, 1, 1], [], []>} : vector<16x32xf32>, vector<32x64xf32>, vector<16x64xf32> -> vector<16x64xf32>
    %411 = vector.broadcast %409 : vector<1x64xf32> to vector<16x64xf32>
    %412 = arith.addf %410, %411 : vector<16x64xf32>
    %cst_181 = arith.constant 5.000000e-01 : f32
    %413 = vector.broadcast %cst_181 : f32 to vector<16x64xf32>
    %414 = arith.mulf %413, %412 : vector<16x64xf32>
    %cst_182 = arith.constant 4.471500e-02 : f32
    %415 = vector.broadcast %cst_182 : f32 to vector<16x64xf32>
    %416 = arith.mulf %415, %412 : vector<16x64xf32>
    %417 = arith.mulf %416, %412 : vector<16x64xf32>
    %418 = arith.mulf %417, %412 : vector<16x64xf32>
    %419 = arith.addf %412, %418 : vector<16x64xf32>
    %cst_183 = arith.constant 0.797884583 : f32
    %420 = vector.broadcast %cst_183 : f32 to vector<16x64xf32>
    %421 = arith.mulf %420, %419 : vector<16x64xf32>
    %422 = math.tanh %421 : vector<16x64xf32>
    %cst_184 = arith.constant 1.000000e+00 : f32
    %423 = vector.broadcast %cst_184 : f32 to vector<16x64xf32>
    %424 = arith.addf %423, %422 : vector<16x64xf32>
    %425 = arith.mulf %414, %424 : vector<16x64xf32>
    %c1_185 = arith.constant 1 : index
    %c0_186 = arith.constant 0 : index
    %c0_187 = arith.constant 0 : index
    %426 = vector.load %arg21[%c1_185, %c0_186, %c0_187] : memref<2x64x32xf32, #tpu.memory_space<vmem>>, vector<1x64x32xf32>
    %427 = vector.shape_cast %426 : vector<1x64x32xf32> to vector<64x32xf32>
    %c1_188 = arith.constant 1 : index
    %c0_189 = arith.constant 0 : index
    %c0_190 = arith.constant 0 : index
    %428 = vector.load %arg22[%c1_188, %c0_189, %c0_190] : memref<2x1x32xf32, #tpu.memory_space<vmem>>, vector<1x1x32xf32>
    %429 = vector.shape_cast %428 : vector<1x1x32xf32> to vector<1x32xf32>
    %cst_191 = arith.constant dense<0.000000e+00> : vector<16x32xf32>
    %430 = tpu.matmul %425, %427, %cst_191 {dimension_numbers = #tpu.dot_dimension_numbers<[1], [0], [0], [1], [0, 0, 1, 1], [], []>} : vector<16x64xf32>, vector<64x32xf32>, vector<16x32xf32> -> vector<16x32xf32>
    %431 = vector.broadcast %429 : vector<1x32xf32> to vector<16x32xf32>
    %432 = arith.addf %430, %431 : vector<16x32xf32>
    %433 = arith.addf %405, %432 : vector<16x32xf32>
    %c1_192 = arith.constant 1 : index
    %c0_193 = arith.constant 0 : index
    %c0_194 = arith.constant 0 : index
    %434 = vector.load %arg23[%c1_192, %c0_193, %c0_194] : memref<2x1x32xf32, #tpu.memory_space<vmem>>, vector<1x1x32xf32>
    %435 = vector.shape_cast %434 : vector<1x1x32xf32> to vector<1x32xf32>
    %c1_195 = arith.constant 1 : index
    %c0_196 = arith.constant 0 : index
    %c0_197 = arith.constant 0 : index
    %436 = vector.load %arg24[%c1_195, %c0_196, %c0_197] : memref<2x1x32xf32, #tpu.memory_space<vmem>>, vector<1x1x32xf32>
    %437 = vector.shape_cast %436 : vector<1x1x32xf32> to vector<1x32xf32>
    %cst_198 = arith.constant dense<0.000000e+00> : vector<16xf32>
    %438 = vector.multi_reduction <add>, %433, %cst_198 [1] : vector<16x32xf32> to vector<16xf32>
    %439 = vector.shape_cast %438 : vector<16xf32> to vector<16x1xf32>
    %cst_199 = arith.constant 3.200000e+01 : f32
    %440 = vector.broadcast %cst_199 : f32 to vector<16x1xf32>
    %441 = arith.divf %439, %440 : vector<16x1xf32>
    %442 = vector.broadcast %441 : vector<16x1xf32> to vector<16x32xf32>
    %443 = arith.subf %433, %442 : vector<16x32xf32>
    %444 = arith.mulf %443, %443 : vector<16x32xf32>
    %cst_200 = arith.constant dense<0.000000e+00> : vector<16xf32>
    %445 = vector.multi_reduction <add>, %444, %cst_200 [1] : vector<16x32xf32> to vector<16xf32>
    %446 = vector.shape_cast %445 : vector<16xf32> to vector<16x1xf32>
    %cst_201 = arith.constant 3.200000e+01 : f32
    %447 = vector.broadcast %cst_201 : f32 to vector<16x1xf32>
    %448 = arith.divf %446, %447 : vector<16x1xf32>
    %449 = vector.broadcast %441 : vector<16x1xf32> to vector<16x32xf32>
    %450 = arith.subf %433, %449 : vector<16x32xf32>
    %cst_202 = arith.constant 9.99999996E-13 : f32
    %451 = vector.broadcast %cst_202 : f32 to vector<16x1xf32>
    %452 = arith.addf %448, %451 : vector<16x1xf32>
    %453 = math.rsqrt %452 : vector<16x1xf32>
    %454 = vector.broadcast %453 : vector<16x1xf32> to vector<16x32xf32>
    %455 = arith.mulf %450, %454 : vector<16x32xf32>
    %456 = vector.broadcast %435 : vector<1x32xf32> to vector<16x32xf32>
    %457 = arith.mulf %455, %456 : vector<16x32xf32>
    %458 = vector.broadcast %437 : vector<1x32xf32> to vector<16x32xf32>
    %459 = arith.addf %457, %458 : vector<16x32xf32>
    %c0_203 = arith.constant 0 : index
    %c0_204 = arith.constant 0 : index
    %460 = vector.load %arg3[%c0_203, %c0_204] : memref<2x16xf32, #tpu.memory_space<vmem>>, vector<2x16xf32>
    %cst_205 = arith.constant dense<0.000000e+00> : vector<2x32xf32>
    %461 = tpu.matmul %460, %459, %cst_205 {dimension_numbers = #tpu.dot_dimension_numbers<[1], [0], [0], [1], [0, 0, 1, 1], [], []>} : vector<2x16xf32>, vector<16x32xf32>, vector<2x32xf32> -> vector<2x32xf32>
    %c0_206 = arith.constant 0 : index
    %c0_207 = arith.constant 0 : index
    %462 = vector.load %arg25[%c0_206, %c0_207] : memref<32x32xf32, #tpu.memory_space<vmem>>, vector<32x32xf32>
    %cst_208 = arith.constant dense<0.000000e+00> : vector<2x32xf32>
    %463 = tpu.matmul %461, %462, %cst_208 {dimension_numbers = #tpu.dot_dimension_numbers<[1], [0], [0], [1], [0, 0, 1, 1], [], []>} : vector<2x32xf32>, vector<32x32xf32>, vector<2x32xf32> -> vector<2x32xf32>
    %c0_209 = arith.constant 0 : index
    %c0_210 = arith.constant 0 : index
    %464 = vector.load %arg26[%c0_209, %c0_210] : memref<1x32xf32, #tpu.memory_space<vmem>>, vector<1x32xf32>
    %465 = vector.broadcast %464 : vector<1x32xf32> to vector<2x32xf32>
    %466 = arith.addf %463, %465 : vector<2x32xf32>
    %467 = math.tanh %466 : vector<2x32xf32>
    %c0_211 = arith.constant 0 : index
    %c0_212 = arith.constant 0 : index
    %468 = vector.load %arg27[%c0_211, %c0_212] : memref<32x2xf32, #tpu.memory_space<vmem>>, vector<32x2xf32>
    %cst_213 = arith.constant dense<0.000000e+00> : vector<2x2xf32>
    %469 = tpu.matmul %467, %468, %cst_213 {dimension_numbers = #tpu.dot_dimension_numbers<[1], [0], [0], [1], [0, 0, 1, 1], [], []>} : vector<2x32xf32>, vector<32x2xf32>, vector<2x2xf32> -> vector<2x2xf32>
    %c0_214 = arith.constant 0 : index
    %c0_215 = arith.constant 0 : index
    %470 = vector.load %arg28[%c0_214, %c0_215] : memref<1x2xf32, #tpu.memory_space<vmem>>, vector<1x2xf32>
    %471 = vector.broadcast %470 : vector<1x2xf32> to vector<2x2xf32>
    %472 = arith.addf %469, %471 : vector<2x2xf32>
    %c0_216 = arith.constant 0 : index
    %c0_217 = arith.constant 0 : index
    %473 = vector.load %arg29[%c0_216, %c0_217] : memref<2x2xf32, #tpu.memory_space<vmem>>, vector<2x2xf32>
    tpu.vector_store %arg29[%c0_216, %c0_217], %472 {strides = array<i32>} : memref<2x2xf32, #tpu.memory_space<vmem>>, vector<2x2xf32>,
    return
  }
}

</mosaic_0001>

<llo_original>
// kernel: eq.24
$region0: #{eq.24}
  %s0 = inlined_call_operand.vmem [shape: s32[2,8], index: 0, kind: input, shape index: {}]
  %s1 = inlined_call_operand.vmem [shape: s32[16], index: 1, kind: output, shape index: {}]
  $region1: #{eq.24} parent=0
    #allocation0 [shape = 'u8[4096]{0}', space=vmem, size = 0x1000, scoped, tag = 'scoped mem for output reshape']
    #allocation1 [shape = 'u8[4096]{0}', space=vmem, size = 0x1000, scoped, tag = 'scoped mem for input reshape']
    %s3 = ssub.s32 4, 1
    %v4 = vld [vmem:[%s0] sm:%s3]
    %5 = vst [vmem:[#allocation1] sm:%s3] %v4
    %v6 = vld [vmem:[#allocation1] sm:$0x1]
    %vm7 = vcmask 64512
    %8 = vst.msk [vmem:[#allocation0] sm:$0x1] %vm7, %v6
    %s9 = scalar_lea.vmem [#allocation1], 1
    %v10 = vld [vmem:[%s9] sm:$0x1]
    %11 = vrot.lane.b32.xlu0 %v10, 8
    %v12 = vpop.permute.xlu0 %11
    %vm13 = vcmask 130112
    %14 = vst.msk [vmem:[#allocation0] sm:$0x1] %vm13, %v12
    %s16 = ssub.s32 2, 1
    %v17 = vld [vmem:[#allocation0] sm:%s16]
    %s19 = ssub.s32 2, 1
    %20 = vst [vmem:[%s1] sm:%s19] %v17

// kernel: forward.1
$region0: #{forward.1}
  #allocation0 [shape = 'u32[]', space=smem, size = 0x4, offset = 0x4, fixed_abs, tag = 'smem constant byte address 0x4 - core index']
  #allocation1 [shape = 'u32[72,128]{1,0:T(1,128)}', space=vmem, size = 0x9000, scoped, tag = 'internal scratch']
  %s0 = inlined_call_operand.smem [shape: u32[30], index: -1, kind: input, shape index: {}]
  %s1 = sld [smem:[%s0]]
  %s2 = scalar_lea.smem %s0, 1
  %s3 = sld [smem:[%s2]]
  %s4 = scalar_lea.smem %s0, 2
  %s5 = sld [smem:[%s4]]
  %s6 = scalar_lea.smem %s0, 3
  %s7 = sld [smem:[%s6]]
  %s8 = scalar_lea.smem %s0, 4
  %s9 = sld [smem:[%s8]]
  %s10 = scalar_lea.smem %s0, 5
  %s11 = sld [smem:[%s10]]
  %s12 = scalar_lea.smem %s0, 6
  %s13 = sld [smem:[%s12]]
  %s14 = scalar_lea.smem %s0, 7
  %s15 = sld [smem:[%s14]]
  %s16 = scalar_lea.smem %s0, 8
  %s17 = sld [smem:[%s16]]
  %s18 = scalar_lea.smem %s0, 9
  %s19 = sld [smem:[%s18]]
  %s20 = scalar_lea.smem %s0, 10
  %s21 = sld [smem:[%s20]]
  %s22 = scalar_lea.smem %s0, 11
  %s23 = sld [smem:[%s22]]
  %s24 = scalar_lea.smem %s0, 12
  %s25 = sld [smem:[%s24]]
  %s26 = scalar_lea.smem %s0, 13
  %s27 = sld [smem:[%s26]]
  %s28 = scalar_lea.smem %s0, 14
  %s29 = sld [smem:[%s28]]
  %s30 = scalar_lea.smem %s0, 15
  %s31 = sld [smem:[%s30]]
  %s32 = scalar_lea.smem %s0, 16
  %s33 = sld [smem:[%s32]]
  %s34 = scalar_lea.smem %s0, 17
  %s35 = sld [smem:[%s34]]
  %s36 = scalar_lea.smem %s0, 18
  %s37 = sld [smem:[%s36]]
  %s38 = scalar_lea.smem %s0, 19
  %s39 = sld [smem:[%s38]]
  %s40 = scalar_lea.smem %s0, 20
  %s41 = sld [smem:[%s40]]
  %s42 = scalar_lea.smem %s0, 21
  %s43 = sld [smem:[%s42]]
  %s44 = scalar_lea.smem %s0, 22
  %s45 = sld [smem:[%s44]]
  %s46 = scalar_lea.smem %s0, 23
  %s47 = sld [smem:[%s46]]
  %s48 = scalar_lea.smem %s0, 24
  %s49 = sld [smem:[%s48]]
  %s50 = scalar_lea.smem %s0, 25
  %s51 = sld [smem:[%s50]]
  %s52 = scalar_lea.smem %s0, 26
  %s53 = sld [smem:[%s52]]
  %s54 = scalar_lea.smem %s0, 27
  %s55 = sld [smem:[%s54]]
  %s56 = scalar_lea.smem %s0, 28
  %s57 = sld [smem:[%s56]]
  %s58 = scalar_lea.smem %s0, 29
  %s59 = sld [smem:[%s58]]
  %s60 = sld [smem:[#allocation0]]
  $region126: #{forward.1} parent=0
    _
  %s62 = ssub.s32 1, %s60
  %s63 = scalar_select 0, %s62, %s60
  $region1: #{forward.1} parent=0
    #allocation2 [shape = 'u8[1024]{0}', space=vmem, size = 0x400, scoped, tag = 'output window, operand 0, single buffered']
    #allocation3 [shape = 's32[1]{0}', space=sflag, size = 0x4, scoped, tag = 'scoped memory for forward.1']
    %64 = vsyncpa [#allocation3], 0
    // Predicated region
    $region2: #{forward.1} parent=1 // pred_check
      _
    $region3: #{forward.1} parent=1 // pred_check_branch
      %66 = sbr.rel (0) target = $region5
    $region4: #{forward.1} parent=1 // pred_region
      _
    $region5: #{forward.1} parent=1 // pred_fallthru
      _
    // Predicated region
    $region6: #{forward.1} parent=1 // pred_check
      _
    $region7: #{forward.1} parent=1 // pred_check_branch
      %68 = sbr.rel (0) target = $region9
    $region8: #{forward.1} parent=1 // pred_region
      _
    $region9: #{forward.1} parent=1 // pred_fallthru
      _
    // Predicated region
    $region10: #{forward.1} parent=1 // pred_check
      _
    $region11: #{forward.1} parent=1 // pred_check_branch
      %70 = sbr.rel (0) target = $region13
    $region12: #{forward.1} parent=1 // pred_region
      _
    $region13: #{forward.1} parent=1 // pred_fallthru
      _
    // Predicated region
    $region14: #{forward.1} parent=1 // pred_check
      _
    $region15: #{forward.1} parent=1 // pred_check_branch
      %72 = sbr.rel (0) target = $region17
    $region16: #{forward.1} parent=1 // pred_region
      _
    $region17: #{forward.1} parent=1 // pred_fallthru
      _
    // Predicated region
    $region18: #{forward.1} parent=1 // pred_check
      _
    $region19: #{forward.1} parent=1 // pred_check_branch
      %74 = sbr.rel (0) target = $region21
    $region20: #{forward.1} parent=1 // pred_region
      _
    $region21: #{forward.1} parent=1 // pred_fallthru
      _
    // Predicated region
    $region22: #{forward.1} parent=1 // pred_check
      _
    $region23: #{forward.1} parent=1 // pred_check_branch
      %76 = sbr.rel (0) target = $region25
    $region24: #{forward.1} parent=1 // pred_region
      _
    $region25: #{forward.1} parent=1 // pred_fallthru
      _
    // Predicated region
    $region26: #{forward.1} parent=1 // pred_check
      _
    $region27: #{forward.1} parent=1 // pred_check_branch
      %78 = sbr.rel (0) target = $region29
    $region28: #{forward.1} parent=1 // pred_region
      _
    $region29: #{forward.1} parent=1 // pred_fallthru
      _
    // Predicated region
    $region30: #{forward.1} parent=1 // pred_check
      _
    $region31: #{forward.1} parent=1 // pred_check_branch
      %80 = sbr.rel (0) target = $region33
    $region32: #{forward.1} parent=1 // pred_region
      _
    $region33: #{forward.1} parent=1 // pred_fallthru
      _
    // Predicated region
    $region34: #{forward.1} parent=1 // pred_check
      _
    $region35: #{forward.1} parent=1 // pred_check_branch
      %82 = sbr.rel (0) target = $region37
    $region36: #{forward.1} parent=1 // pred_region
      _
    $region37: #{forward.1} parent=1 // pred_fallthru
      _
    // Predicated region
    $region38: #{forward.1} parent=1 // pred_check
      _
    $region39: #{forward.1} parent=1 // pred_check_branch
      %84 = sbr.rel (0) target = $region41
    $region40: #{forward.1} parent=1 // pred_region
      _
    $region41: #{forward.1} parent=1 // pred_fallthru
      _
    // Predicated region
    $region42: #{forward.1} parent=1 // pred_check
      _
    $region43: #{forward.1} parent=1 // pred_check_branch
      %86 = sbr.rel (0) target = $region45
    $region44: #{forward.1} parent=1 // pred_region
      _
    $region45: #{forward.1} parent=1 // pred_fallthru
      _
    // Predicated region
    $region46: #{forward.1} parent=1 // pred_check
      _
    $region47: #{forward.1} parent=1 // pred_check_branch
      %88 = sbr.rel (0) target = $region49
    $region48: #{forward.1} parent=1 // pred_region
      _
    $region49: #{forward.1} parent=1 // pred_fallthru
      _
    // Predicated region
    $region50: #{forward.1} parent=1 // pred_check
      _
    $region51: #{forward.1} parent=1 // pred_check_branch
      %90 = sbr.rel (0) target = $region53
    $region52: #{forward.1} parent=1 // pred_region
      _
    $region53: #{forward.1} parent=1 // pred_fallthru
      _
    // Predicated region
    $region54: #{forward.1} parent=1 // pred_check
      _
    $region55: #{forward.1} parent=1 // pred_check_branch
      %92 = sbr.rel (0) target = $region57
    $region56: #{forward.1} parent=1 // pred_region
      _
    $region57: #{forward.1} parent=1 // pred_fallthru
      _
    // Predicated region
    $region58: #{forward.1} parent=1 // pred_check
      _
    $region59: #{forward.1} parent=1 // pred_check_branch
      %94 = sbr.rel (0) target = $region61
    $region60: #{forward.1} parent=1 // pred_region
      _
    $region61: #{forward.1} parent=1 // pred_fallthru
      _
    // Predicated region
    $region62: #{forward.1} parent=1 // pred_check
      _
    $region63: #{forward.1} parent=1 // pred_check_branch
      %96 = sbr.rel (0) target = $region65
    $region64: #{forward.1} parent=1 // pred_region
      _
    $region65: #{forward.1} parent=1 // pred_fallthru
      _
    // Predicated region
    $region66: #{forward.1} parent=1 // pred_check
      _
    $region67: #{forward.1} parent=1 // pred_check_branch
      %98 = sbr.rel (0) target = $region69
    $region68: #{forward.1} parent=1 // pred_region
      _
    $region69: #{forward.1} parent=1 // pred_fallthru
      _
    // Predicated region
    $region70: #{forward.1} parent=1 // pred_check
      _
    $region71: #{forward.1} parent=1 // pred_check_branch
      %100 = sbr.rel (0) target = $region73
    $region72: #{forward.1} parent=1 // pred_region
      _
    $region73: #{forward.1} parent=1 // pred_fallthru
      _
    // Predicated region
    $region74: #{forward.1} parent=1 // pred_check
      _
    $region75: #{forward.1} parent=1 // pred_check_branch
      %102 = sbr.rel (0) target = $region77
    $region76: #{forward.1} parent=1 // pred_region
      _
    $region77: #{forward.1} parent=1 // pred_fallthru
      _
    // Predicated region
    $region78: #{forward.1} parent=1 // pred_check
      _
    $region79: #{forward.1} parent=1 // pred_check_branch
      %104 = sbr.rel (0) target = $region81
    $region80: #{forward.1} parent=1 // pred_region
      _
    $region81: #{forward.1} parent=1 // pred_fallthru
      _
    // Predicated region
    $region82: #{forward.1} parent=1 // pred_check
      _
    $region83: #{forward.1} parent=1 // pred_check_branch
      %106 = sbr.rel (0) target = $region85
    $region84: #{forward.1} parent=1 // pred_region
      _
    $region85: #{forward.1} parent=1 // pred_fallthru
      _
    // Predicated region
    $region86: #{forward.1} parent=1 // pred_check
      _
    $region87: #{forward.1} parent=1 // pred_check_branch
      %108 = sbr.rel (0) target = $region89
    $region88: #{forward.1} parent=1 // pred_region
      _
    $region89: #{forward.1} parent=1 // pred_fallthru
      _
    // Predicated region
    $region90: #{forward.1} parent=1 // pred_check
      _
    $region91: #{forward.1} parent=1 // pred_check_branch
      %110 = sbr.rel (0) target = $region93
    $region92: #{forward.1} parent=1 // pred_region
      _
    $region93: #{forward.1} parent=1 // pred_fallthru
      _
    // Predicated region
    $region94: #{forward.1} parent=1 // pred_check
      _
    $region95: #{forward.1} parent=1 // pred_check_branch
      %112 = sbr.rel (0) target = $region97
    $region96: #{forward.1} parent=1 // pred_region
      _
    $region97: #{forward.1} parent=1 // pred_fallthru
      _
    // Predicated region
    $region98: #{forward.1} parent=1 // pred_check
      _
    $region99: #{forward.1} parent=1 // pred_check_branch
      %114 = sbr.rel (0) target = $region101
    $region100: #{forward.1} parent=1 // pred_region
      _
    $region101: #{forward.1} parent=1 // pred_fallthru
      _
    // Predicated region
    $region102: #{forward.1} parent=1 // pred_check
      _
    $region103: #{forward.1} parent=1 // pred_check_branch
      %116 = sbr.rel (0) target = $region105
    $region104: #{forward.1} parent=1 // pred_region
      _
    $region105: #{forward.1} parent=1 // pred_fallthru
      _
    // Predicated region
    $region106: #{forward.1} parent=1 // pred_check
      _
    $region107: #{forward.1} parent=1 // pred_check_branch
      %118 = sbr.rel (0) target = $region109
    $region108: #{forward.1} parent=1 // pred_region
      _
    $region109: #{forward.1} parent=1 // pred_fallthru
      _
    // Predicated region
    $region110: #{forward.1} parent=1 // pred_check
      _
    $region111: #{forward.1} parent=1 // pred_check_branch
      %120 = sbr.rel (0) target = $region113
    $region112: #{forward.1} parent=1 // pred_region
      _
    $region113: #{forward.1} parent=1 // pred_fallthru
      _
    // Predicated region
    $region114: #{forward.1} parent=1 // pred_check
      _
    $region115: #{forward.1} parent=1 // pred_check_branch
      %122 = sbr.rel (0) target = $region117
    $region116: #{forward.1} parent=1 // pred_region
      _
    $region117: #{forward.1} parent=1 // pred_fallthru
      _
    %v123 = vld [vmem:[%s3] sm:$0xff]
    %v124 = vld [vmem:[%s3 + $0x8] sm:$0xff]
    %v125 = vld [vmem:[%s1] sm:$0xff]
    %v126 = vld [vmem:[%s1 + $0x8] sm:$0xff]
    %v127 = vld [vmem:[%s1 + $0x10] sm:$0xff]
    %v128 = vld [vmem:[%s1 + $0x18] sm:$0xff]
    %vm129 = vcmask 261120
    %v131 = vsel %vm129, %v123, 0
    %v134 = vsel %vm129, %v124, 0
    %136 = vmatpush.msra.mxu0 0.0
    %137 = vmatpush.msra.mxu0 0.0
    %138 = vmatpush.msra.mxu0 0.0
    %139 = vmatpush.msra.mxu0 0.0
    %140 = vmatpush.msra.mxu0 0.0
    %141 = vmatpush.msra.mxu0 0.0
    %142 = vmatpush.msra.mxu0 0.0
    %143 = vmatpush.msra.mxu0 0.0
    %144 = vmatpush.msra.mxu0 0.0
    %145 = vmatpush.msra.mxu0 0.0
    %146 = vmatpush.msra.mxu0 0.0
    %147 = vmatpush.msra.mxu0 0.0
    %148 = vmatpush.msra.mxu0 %v128
    %149 = vmatpush.msra.mxu0 %v127
    %150 = vmatpush.msra.mxu0 %v126
    %151 = vmatpush.msra.mxu0 %v125
    %152 = vmatmul.f32.gmra.mxu0 %v131
    %v153 = vpop.f32.mrf.mxu0
    %v154 = vadd.f32 0.0, %v153
    %155 = vmatmul.f32.gmra.mxu0 %v134
    %v156 = vpop.f32.mrf.mxu0
    %v157 = vadd.f32 0.0, %v156
    %158 = vdwg.mxu0
    %v159 = vld [vmem:[%s11] sm:$0xff]
    %v160 = vld [vmem:[%s11 + $0x8] sm:$0xff]
    %v161 = vld [vmem:[%s11 + $0x10] sm:$0xff]
    %v162 = vld [vmem:[%s11 + $0x18] sm:$0xff]
    %v163 = vld [vmem:[%s11 + $0x20] sm:$0xff]
    %v164 = vld [vmem:[%s11 + $0x28] sm:$0xff]
    %v165 = vld [vmem:[%s11 + $0x30] sm:$0xff]
    %v166 = vld [vmem:[%s11 + $0x38] sm:$0xff]
    %v167 = vld [vmem:[%s13] sm:$0x1]
    %v169 = vperm.slane %v167, 0
    %vm171 = vcmask 523264
    %v173 = vsel %vm171, %v154, 0
    %v176 = vsel %vm171, %v157, 0
    %178 = vmatpush.msra.mxu0 0.0
    %179 = vmatpush.msra.mxu0 0.0
    %180 = vmatpush.msra.mxu0 0.0
    %181 = vmatpush.msra.mxu0 0.0
    %182 = vmatpush.msra.mxu0 0.0
    %183 = vmatpush.msra.mxu0 0.0
    %184 = vmatpush.msra.mxu0 0.0
    %185 = vmatpush.msra.mxu0 0.0
    %186 = vmatpush.msra.mxu0 %v166
    %187 = vmatpush.msra.mxu0 %v165
    %188 = vmatpush.msra.mxu0 %v164
    %189 = vmatpush.msra.mxu0 %v163
    %190 = vmatpush.msra.mxu0 %v162
    %191 = vmatpush.msra.mxu0 %v161
    %192 = vmatpush.msra.mxu0 %v160
    %193 = vmatpush.msra.mxu0 %v159
    %194 = vmatmul.f32.gmra.mxu0 %v173
    %v195 = vpop.f32.mrf.mxu0
    %v196 = vadd.f32 %v169, %v195
    %197 = vmatmul.f32.gmra.mxu0 %v176
    %v198 = vpop.f32.mrf.mxu0
    %v199 = vadd.f32 %v169, %v198
    %200 = vdwg.mxu0
    %v201 = vld [vmem:[%s9] sm:$0xff]
    %v202 = vld [vmem:[%s9 + $0x8] sm:$0xff]
    %v203 = vadd.f32 %v196, %v201
    %v204 = vadd.f32 %v199, %v202
    %v205 = vld [vmem:[%s15] sm:$0x1]
    %v206 = vld [vmem:[%s17] sm:$0x1]
    %v207 = vsel %vm129, %v203, 0.0
    %208 = vadd.xlane.f32.xlu0 %v207
    %v209 = vpop.xlane.xlu0 %208
    %v210 = vsel %vm129, %v204, 0.0
    %211 = vadd.xlane.f32.xlu0 %v210
    %v212 = vpop.xlane.xlu0 %211
    %v213 = vrcp.pop 32.0
    %v214 = vmul.f32 32.0, %v213
    %v215 = vsub.f32 1.0, %v214
    %v216 = vmul.f32 %v213, %v215
    %v217 = vadd.f32 %v213, %v216
    %vm218 = vweird.f32 %v213
    %v219 = vsel %vm218, %v213, %v217
    %v220 = vmul.f32 %v209, %v219
    %v221 = vmul.f32 %v212, %v219
    %v222 = vsub.f32 %v203, %v220
    %v223 = vsub.f32 %v204, %v221
    %v224 = vmul.f32 %v222, %v222
    %v225 = vmul.f32 %v223, %v223
    %v226 = vsel %vm129, %v224, 0.0
    %227 = vadd.xlane.f32.xlu0 %v226
    %v228 = vpop.xlane.xlu0 %227
    %v229 = vsel %vm129, %v225, 0.0
    %230 = vadd.xlane.f32.xlu0 %v229
    %v231 = vpop.xlane.xlu0 %230
    %v232 = vmul.f32 %v228, %v219
    %v233 = vmul.f32 %v231, %v219
    %v234 = vadd.f32 %v232, 1e-12
    %v235 = vadd.f32 %v233, 1e-12
    %v236 = vrsqrt.pop %v234
    %v237 = vmul.f32 %v236, %v234
    %v238 = vmul.f32 %v237, %v236
    %v239 = vmul.f32 0.5, %v238
    %v240 = vsub.f32 1.5, %v239
    %v241 = vmul.f32 %v236, %v240
    %vm242 = vweird.f32 %v234
    %vm243 = vweird.f32 %v236
    %vm244 = vmor %vm242, %vm243
    %v245 = vsel %vm244, %v236, %v241
    %v246 = vrsqrt.pop %v235
    %v247 = vmul.f32 %v246, %v235
    %v248 = vmul.f32 %v247, %v246
    %v249 = vmul.f32 0.5, %v248
    %v250 = vsub.f32 1.5, %v249
    %v251 = vmul.f32 %v246, %v250
    %vm252 = vweird.f32 %v235
    %vm253 = vweird.f32 %v246
    %vm254 = vmor %vm252, %vm253
    %v255 = vsel %vm254, %v246, %v251
    %v256 = vmul.f32 %v222, %v245
    %v257 = vmul.f32 %v223, %v255
    %v259 = vperm.slane %v205, 0
    %v261 = vmul.f32 %v256, %v259
    %v262 = vmul.f32 %v257, %v259
    %v264 = vperm.slane %v206, 0
    %v266 = vadd.f32 %v261, %v264
    %v267 = vadd.f32 %v262, %v264
    %v268 = vld [vmem:[%s5] sm:$0xff]
    %v269 = vld [vmem:[%s5 + $0x8] sm:$0xff]
    %v270 = vlaneseq
    %v271 = vand.u32 %v270, 127
    %v272 = vld [vmem:[%s19] sm:$0xff]
    %v273 = vld [vmem:[%s19 + $0x8] sm:$0xff]
    %v274 = vld [vmem:[%s19 + $0x10] sm:$0xff]
    %v275 = vld [vmem:[%s19 + $0x18] sm:$0xff]
    %v276 = vld [vmem:[%s21] sm:$0x1]
    %v278 = vperm.slane %v276, 0
    %v281 = vsel %vm129, %v266, 0
    %v284 = vsel %vm129, %v267, 0
    %286 = vmatpush.msra.mxu0 0.0
    %287 = vmatpush.msra.mxu0 0.0
    %288 = vmatpush.msra.mxu0 0.0
    %289 = vmatpush.msra.mxu0 0.0
    %290 = vmatpush.msra.mxu0 0.0
    %291 = vmatpush.msra.mxu0 0.0
    %292 = vmatpush.msra.mxu0 0.0
    %293 = vmatpush.msra.mxu0 0.0
    %294 = vmatpush.msra.mxu0 0.0
    %295 = vmatpush.msra.mxu0 0.0
    %296 = vmatpush.msra.mxu0 0.0
    %297 = vmatpush.msra.mxu0 0.0
    %298 = vmatpush.msra.mxu0 %v275
    %299 = vmatpush.msra.mxu0 %v274
    %300 = vmatpush.msra.mxu0 %v273
    %301 = vmatpush.msra.mxu0 %v272
    %302 = vmatmul.f32.gmra.mxu0 %v281
    %v303 = vpop.f32.mrf.mxu0
    %v304 = vadd.f32 %v278, %v303
    %305 = vmatmul.f32.gmra.mxu0 %v284
    %v306 = vpop.f32.mrf.mxu0
    %v307 = vadd.f32 %v278, %v306
    %308 = vdwg.mxu0
    %v309 = vmul.f32 %v304, 0.35355338
    %v310 = vmul.f32 %v307, 0.35355338
    %v311 = vld [vmem:[%s23] sm:$0xff]
    %v312 = vld [vmem:[%s23 + $0x8] sm:$0xff]
    %v313 = vld [vmem:[%s23 + $0x10] sm:$0xff]
    %v314 = vld [vmem:[%s23 + $0x18] sm:$0xff]
    %v315 = vld [vmem:[%s25] sm:$0x1]
    %v317 = vperm.slane %v315, 0
    %319 = vmatpush.msra.mxu0 0.0
    %320 = vmatpush.msra.mxu0 0.0
    %321 = vmatpush.msra.mxu0 0.0
    %322 = vmatpush.msra.mxu0 0.0
    %323 = vmatpush.msra.mxu0 0.0
    %324 = vmatpush.msra.mxu0 0.0
    %325 = vmatpush.msra.mxu0 0.0
    %326 = vmatpush.msra.mxu0 0.0
    %327 = vmatpush.msra.mxu0 0.0
    %328 = vmatpush.msra.mxu0 0.0
    %329 = vmatpush.msra.mxu0 0.0
    %330 = vmatpush.msra.mxu0 0.0
    %331 = vmatpush.msra.mxu0 %v314
    %332 = vmatpush.msra.mxu0 %v313
    %333 = vmatpush.msra.mxu0 %v312
    %334 = vmatpush.msra.mxu0 %v311
    %335 = vmatmul.f32.gmra.mxu0 %v281
    %v336 = vpop.f32.mrf.mxu0
    %v337 = vadd.f32 %v317, %v336
    %338 = vmatmul.f32.gmra.mxu0 %v284
    %v339 = vpop.f32.mrf.mxu0
    %v340 = vadd.f32 %v317, %v339
    %341 = vdwg.mxu0
    %v342 = vld [vmem:[%s27] sm:$0xff]
    %v343 = vld [vmem:[%s27 + $0x8] sm:$0xff]
    %v344 = vld [vmem:[%s27 + $0x10] sm:$0xff]
    %v345 = vld [vmem:[%s27 + $0x18] sm:$0xff]
    %v346 = vld [vmem:[%s29] sm:$0x1]
    %v348 = vperm.slane %v346, 0
    %350 = vmatpush.msra.mxu0 0.0
    %351 = vmatpush.msra.mxu0 0.0
    %352 = vmatpush.msra.mxu0 0.0
    %353 = vmatpush.msra.mxu0 0.0
    %354 = vmatpush.msra.mxu0 0.0
    %355 = vmatpush.msra.mxu0 0.0
    %356 = vmatpush.msra.mxu0 0.0
    %357 = vmatpush.msra.mxu0 0.0
    %358 = vmatpush.msra.mxu0 0.0
    %359 = vmatpush.msra.mxu0 0.0
    %360 = vmatpush.msra.mxu0 0.0
    %361 = vmatpush.msra.mxu0 0.0
    %362 = vmatpush.msra.mxu0 %v345
    %363 = vmatpush.msra.mxu0 %v344
    %364 = vmatpush.msra.mxu0 %v343
    %365 = vmatpush.msra.mxu0 %v342
    %366 = vmatmul.f32.gmra.mxu0 %v281
    %v367 = vpop.f32.mrf.mxu0
    %v368 = vadd.f32 %v348, %v367
    %369 = vmatmul.f32.gmra.mxu0 %v284
    %v370 = vpop.f32.mrf.mxu0
    %v371 = vadd.f32 %v348, %v370
    %372 = vdwg.mxu0
    %vm373 = vcmp.ge.s32.totalorder %v271, 0
    %vm374 = vcmp.lt.s32.totalorder %v271, 8
    %vm375 = vmand %vm373, %vm374
    %v376 = vsel %vm375, 1, 0
    %v377 = vcvt.s32.f32 %v376
    %v378 = vmul.f32 %v309, %v377
    %v379 = vmul.f32 %v310, %v377
    %v381 = vsel %vm129, %v378, 0
    %v384 = vsel %vm129, %v379, 0
    %v387 = vsel %vm129, %v337, 0
    %v390 = vsel %vm129, %v340, 0
    %392 = vmatpush.xpose.msra.mxu0 0.0
    %393 = vmatpush.xpose.msra.mxu0 0.0
    %394 = vmatpush.xpose.msra.mxu0 0.0
    %395 = vmatpush.xpose.msra.mxu0 0.0
    %396 = vmatpush.xpose.msra.mxu0 0.0
    %397 = vmatpush.xpose.msra.mxu0 0.0
    %398 = vmatpush.xpose.msra.mxu0 0.0
    %399 = vmatpush.xpose.msra.mxu0 0.0
    %400 = vmatpush.xpose.msra.mxu0 0.0
    %401 = vmatpush.xpose.msra.mxu0 0.0
    %402 = vmatpush.xpose.msra.mxu0 0.0
    %403 = vmatpush.xpose.msra.mxu0 0.0
    %404 = vmatpush.xpose.msra.mxu0 0.0
    %405 = vmatpush.xpose.msra.mxu0 0.0
    %406 = vmatpush.xpose.msra.mxu0 %v390
    %407 = vmatpush.xpose.msra.mxu0 %v387
    %408 = vmatmul.f32.gmra.mxu0 %v381
    %v409 = vpop.f32.mrf.mxu0
    %v410 = vadd.f32 %v268, %v409
    %411 = vmatmul.f32.gmra.mxu0 %v384
    %v412 = vpop.f32.mrf.mxu0
    %v413 = vadd.f32 %v269, %v412
    %414 = vdwg.mxu0
    %vm415 = vcmask 130048
    %v416 = vsel %vm415, %v410, -inf
    %417 = vmax.xlane.f32.xlu0 %v416
    %v418 = vpop.xlane.xlu0 %417
    %v419 = vsel %vm415, %v413, -inf
    %420 = vmax.xlane.f32.xlu0 %v419
    %v421 = vpop.xlane.xlu0 %420
    %v422 = vsub.f32 %v410, %v418
    %v423 = vsub.f32 %v413, %v421
    %v424 = vmul.f32 %v422, 1.442695
    %v425 = vpow.pop %v424
    %v426 = vmul.f32 %v423, 1.442695
    %v427 = vpow.pop %v426
    %v428 = vsel %vm415, %v425, 0.0
    %429 = vadd.xlane.f32.xlu0 %v428
    %v430 = vpop.xlane.xlu0 %429
    %v431 = vsel %vm415, %v427, 0.0
    %432 = vadd.xlane.f32.xlu0 %v431
    %v433 = vpop.xlane.xlu0 %432
    %v434 = vrcp.pop %v430
    %v435 = vrcp.pop %v433
    %v436 = vmul.f32 %v425, %v434
    %v437 = vmul.f32 %v427, %v435
    %v438 = vmul.f32 %v368, %v377
    %v439 = vmul.f32 %v371, %v377
    %vm440 = vcmp.ge.s32.totalorder %v271, 8
    %vm441 = vcmp.lt.s32.totalorder %v271, 16
    %vm442 = vmand %vm440, %vm441
    %v443 = vsel %vm442, 1, 0
    %v444 = vcvt.s32.f32 %v443
    %v445 = vmul.f32 %v309, %v444
    %v446 = vmul.f32 %v310, %v444
    %v448 = vsel %vm129, %v445, 0
    %v451 = vsel %vm129, %v446, 0
    %453 = vmatpush.xpose.msra.mxu0 0.0
    %454 = vmatpush.xpose.msra.mxu0 0.0
    %455 = vmatpush.xpose.msra.mxu0 0.0
    %456 = vmatpush.xpose.msra.mxu0 0.0
    %457 = vmatpush.xpose.msra.mxu0 0.0
    %458 = vmatpush.xpose.msra.mxu0 0.0
    %459 = vmatpush.xpose.msra.mxu0 0.0
    %460 = vmatpush.xpose.msra.mxu0 0.0
    %461 = vmatpush.xpose.msra.mxu0 0.0
    %462 = vmatpush.xpose.msra.mxu0 0.0
    %463 = vmatpush.xpose.msra.mxu0 0.0
    %464 = vmatpush.xpose.msra.mxu0 0.0
    %465 = vmatpush.xpose.msra.mxu0 0.0
    %466 = vmatpush.xpose.msra.mxu0 0.0
    %467 = vmatpush.xpose.msra.mxu0 %v390
    %468 = vmatpush.xpose.msra.mxu0 %v387
    %469 = vmatmul.f32.gmra.mxu0 %v448
    %v470 = vpop.f32.mrf.mxu0
    %v471 = vadd.f32 %v268, %v470
    %472 = vmatmul.f32.gmra.mxu0 %v451
    %v473 = vpop.f32.mrf.mxu0
    %v474 = vadd.f32 %v269, %v473
    %475 = vdwg.mxu0
    %v476 = vsel %vm415, %v471, -inf
    %477 = vmax.xlane.f32.xlu0 %v476
    %v478 = vpop.xlane.xlu0 %477
    %v479 = vsel %vm415, %v474, -inf
    %480 = vmax.xlane.f32.xlu0 %v479
    %v481 = vpop.xlane.xlu0 %480
    %v482 = vsub.f32 %v471, %v478
    %v483 = vsub.f32 %v474, %v481
    %v484 = vmul.f32 %v482, 1.442695
    %v485 = vpow.pop %v484
    %v486 = vmul.f32 %v483, 1.442695
    %v487 = vpow.pop %v486
    %v488 = vsel %vm415, %v485, 0.0
    %489 = vadd.xlane.f32.xlu0 %v488
    %v490 = vpop.xlane.xlu0 %489
    %v491 = vsel %vm415, %v487, 0.0
    %492 = vadd.xlane.f32.xlu0 %v491
    %v493 = vpop.xlane.xlu0 %492
    %v494 = vrcp.pop %v490
    %v495 = vrcp.pop %v493
    %v496 = vmul.f32 %v485, %v494
    %v497 = vmul.f32 %v487, %v495
    %v498 = vmul.f32 %v368, %v444
    %v499 = vmul.f32 %v371, %v444
    %v501 = vsel %vm415, %v496, 0
    %v504 = vsel %vm415, %v497, 0
    %506 = vmatpush.msra.mxu0 0.0
    %507 = vmatpush.msra.mxu0 0.0
    %508 = vmatpush.msra.mxu0 0.0
    %509 = vmatpush.msra.mxu0 0.0
    %510 = vmatpush.msra.mxu0 0.0
    %511 = vmatpush.msra.mxu0 0.0
    %512 = vmatpush.msra.mxu0 0.0
    %513 = vmatpush.msra.mxu0 0.0
    %514 = vmatpush.msra.mxu0 0.0
    %515 = vmatpush.msra.mxu0 0.0
    %516 = vmatpush.msra.mxu0 0.0
    %517 = vmatpush.msra.mxu0 0.0
    %518 = vmatpush.msra.mxu0 0.0
    %519 = vmatpush.msra.mxu0 0.0
    %520 = vmatpush.msra.mxu0 %v499
    %521 = vmatpush.msra.mxu0 %v498
    %522 = vmatmul.f32.gmra.mxu0 %v501
    %v523 = vpop.f32.mrf.mxu0
    %v524 = vadd.f32 0.0, %v523
    %525 = vmatmul.f32.gmra.mxu0 %v504
    %v526 = vpop.f32.mrf.mxu0
    %v527 = vadd.f32 0.0, %v526
    %528 = vdwg.mxu0
    %v530 = vsel %vm415, %v436, 0
    %v533 = vsel %vm415, %v437, 0
    %535 = vmatpush.msra.mxu0 0.0
    %536 = vmatpush.msra.mxu0 0.0
    %537 = vmatpush.msra.mxu0 0.0
    %538 = vmatpush.msra.mxu0 0.0
    %539 = vmatpush.msra.mxu0 0.0
    %540 = vmatpush.msra.mxu0 0.0
    %541 = vmatpush.msra.mxu0 0.0
    %542 = vmatpush.msra.mxu0 0.0
    %543 = vmatpush.msra.mxu0 0.0
    %544 = vmatpush.msra.mxu0 0.0
    %545 = vmatpush.msra.mxu0 0.0
    %546 = vmatpush.msra.mxu0 0.0
    %547 = vmatpush.msra.mxu0 0.0
    %548 = vmatpush.msra.mxu0 0.0
    %549 = vmatpush.msra.mxu0 %v439
    %550 = vmatpush.msra.mxu0 %v438
    %551 = vmatmul.f32.gmra.mxu0 %v530
    %v552 = vpop.f32.mrf.mxu0
    %v553 = vadd.f32 %v524, %v552
    %554 = vmatmul.f32.gmra.mxu0 %v533
    %v555 = vpop.f32.mrf.mxu0
    %v556 = vadd.f32 %v527, %v555
    %557 = vdwg.mxu0
    %vm558 = vcmp.ge.s32.totalorder %v271, 16
    %vm559 = vcmp.lt.s32.totalorder %v271, 24
    %vm560 = vmand %vm558, %vm559
    %v561 = vsel %vm560, 1, 0
    %v562 = vcvt.s32.f32 %v561
    %v563 = vmul.f32 %v309, %v562
    %v564 = vmul.f32 %v310, %v562
    %v566 = vsel %vm129, %v563, 0
    %v569 = vsel %vm129, %v564, 0
    %571 = vmatpush.xpose.msra.mxu0 0.0
    %572 = vmatpush.xpose.msra.mxu0 0.0
    %573 = vmatpush.xpose.msra.mxu0 0.0
    %574 = vmatpush.xpose.msra.mxu0 0.0
    %575 = vmatpush.xpose.msra.mxu0 0.0
    %576 = vmatpush.xpose.msra.mxu0 0.0
    %577 = vmatpush.xpose.msra.mxu0 0.0
    %578 = vmatpush.xpose.msra.mxu0 0.0
    %579 = vmatpush.xpose.msra.mxu0 0.0
    %580 = vmatpush.xpose.msra.mxu0 0.0
    %581 = vmatpush.xpose.msra.mxu0 0.0
    %582 = vmatpush.xpose.msra.mxu0 0.0
    %583 = vmatpush.xpose.msra.mxu0 0.0
    %584 = vmatpush.xpose.msra.mxu0 0.0
    %585 = vmatpush.xpose.msra.mxu0 %v390
    %586 = vmatpush.xpose.msra.mxu0 %v387
    %587 = vmatmul.f32.gmra.mxu0 %v566
    %v588 = vpop.f32.mrf.mxu0
    %v589 = vadd.f32 %v268, %v588
    %590 = vmatmul.f32.gmra.mxu0 %v569
    %v591 = vpop.f32.mrf.mxu0
    %v592 = vadd.f32 %v269, %v591
    %593 = vdwg.mxu0
    %v594 = vsel %vm415, %v589, -inf
    %595 = vmax.xlane.f32.xlu0 %v594
    %v596 = vpop.xlane.xlu0 %595
    %v597 = vsel %vm415, %v592, -inf
    %598 = vmax.xlane.f32.xlu0 %v597
    %v599 = vpop.xlane.xlu0 %598
    %v600 = vsub.f32 %v589, %v596
    %v601 = vsub.f32 %v592, %v599
    %v602 = vmul.f32 %v600, 1.442695
    %v603 = vpow.pop %v602
    %v604 = vmul.f32 %v601, 1.442695
    %v605 = vpow.pop %v604
    %v606 = vsel %vm415, %v603, 0.0
    %607 = vadd.xlane.f32.xlu0 %v606
    %v608 = vpop.xlane.xlu0 %607
    %v609 = vsel %vm415, %v605, 0.0
    %610 = vadd.xlane.f32.xlu0 %v609
    %v611 = vpop.xlane.xlu0 %610
    %v612 = vrcp.pop %v608
    %v613 = vrcp.pop %v611
    %v614 = vmul.f32 %v603, %v612
    %v615 = vmul.f32 %v605, %v613
    %v616 = vmul.f32 %v368, %v562
    %v617 = vmul.f32 %v371, %v562
    %v619 = vsel %vm415, %v614, 0
    %v622 = vsel %vm415, %v615, 0
    %624 = vmatpush.msra.mxu0 0.0
    %625 = vmatpush.msra.mxu0 0.0
    %626 = vmatpush.msra.mxu0 0.0
    %627 = vmatpush.msra.mxu0 0.0
    %628 = vmatpush.msra.mxu0 0.0
    %629 = vmatpush.msra.mxu0 0.0
    %630 = vmatpush.msra.mxu0 0.0
    %631 = vmatpush.msra.mxu0 0.0
    %632 = vmatpush.msra.mxu0 0.0
    %633 = vmatpush.msra.mxu0 0.0
    %634 = vmatpush.msra.mxu0 0.0
    %635 = vmatpush.msra.mxu0 0.0
    %636 = vmatpush.msra.mxu0 0.0
    %637 = vmatpush.msra.mxu0 0.0
    %638 = vmatpush.msra.mxu0 %v617
    %639 = vmatpush.msra.mxu0 %v616
    %640 = vmatmul.f32.gmra.mxu0 %v619
    %v641 = vpop.f32.mrf.mxu0
    %v642 = vadd.f32 0.0, %v641
    %643 = vmatmul.f32.gmra.mxu0 %v622
    %v644 = vpop.f32.mrf.mxu0
    %v645 = vadd.f32 0.0, %v644
    %646 = vdwg.mxu0
    %v647 = vadd.f32 %v553, %v642
    %v648 = vadd.f32 %v556, %v645
    %vm649 = vcmp.ge.s32.totalorder %v271, 24
    %vm650 = vcmp.lt.s32.totalorder %v271, 32
    %vm651 = vmand %vm649, %vm650
    %v652 = vsel %vm651, 1, 0
    %v653 = vcvt.s32.f32 %v652
    %v654 = vmul.f32 %v309, %v653
    %v655 = vmul.f32 %v310, %v653
    %v657 = vsel %vm129, %v654, 0
    %v660 = vsel %vm129, %v655, 0
    %662 = vmatpush.xpose.msra.mxu0 0.0
    %663 = vmatpush.xpose.msra.mxu0 0.0
    %664 = vmatpush.xpose.msra.mxu0 0.0
    %665 = vmatpush.xpose.msra.mxu0 0.0
    %666 = vmatpush.xpose.msra.mxu0 0.0
    %667 = vmatpush.xpose.msra.mxu0 0.0
    %668 = vmatpush.xpose.msra.mxu0 0.0
    %669 = vmatpush.xpose.msra.mxu0 0.0
    %670 = vmatpush.xpose.msra.mxu0 0.0
    %671 = vmatpush.xpose.msra.mxu0 0.0
    %672 = vmatpush.xpose.msra.mxu0 0.0
    %673 = vmatpush.xpose.msra.mxu0 0.0
    %674 = vmatpush.xpose.msra.mxu0 0.0
    %675 = vmatpush.xpose.msra.mxu0 0.0
    %676 = vmatpush.xpose.msra.mxu0 %v390
    %677 = vmatpush.xpose.msra.mxu0 %v387
    %678 = vmatmul.f32.gmra.mxu0 %v657
    %v679 = vpop.f32.mrf.mxu0
    %v680 = vadd.f32 %v268, %v679
    %681 = vmatmul.f32.gmra.mxu0 %v660
    %v682 = vpop.f32.mrf.mxu0
    %v683 = vadd.f32 %v269, %v682
    %684 = vdwg.mxu0
    %v685 = vsel %vm415, %v680, -inf
    %686 = vmax.xlane.f32.xlu0 %v685
    %v687 = vpop.xlane.xlu0 %686
    %v688 = vsel %vm415, %v683, -inf
    %689 = vmax.xlane.f32.xlu0 %v688
    %v690 = vpop.xlane.xlu0 %689
    %v691 = vsub.f32 %v680, %v687
    %v692 = vsub.f32 %v683, %v690
    %v693 = vmul.f32 %v691, 1.442695
    %v694 = vpow.pop %v693
    %v695 = vmul.f32 %v692, 1.442695
    %v696 = vpow.pop %v695
    %v697 = vsel %vm415, %v694, 0.0
    %698 = vadd.xlane.f32.xlu0 %v697
    %v699 = vpop.xlane.xlu0 %698
    %v700 = vsel %vm415, %v696, 0.0
    %701 = vadd.xlane.f32.xlu0 %v700
    %v702 = vpop.xlane.xlu0 %701
    %v703 = vrcp.pop %v699
    %v704 = vrcp.pop %v702
    %v705 = vmul.f32 %v694, %v703
    %v706 = vmul.f32 %v696, %v704
    %v707 = vmul.f32 %v368, %v653
    %v708 = vmul.f32 %v371, %v653
    %v710 = vsel %vm415, %v705, 0
    %v713 = vsel %vm415, %v706, 0
    %715 = vmatpush.msra.mxu0 0.0
    %716 = vmatpush.msra.mxu0 0.0
    %717 = vmatpush.msra.mxu0 0.0
    %718 = vmatpush.msra.mxu0 0.0
    %719 = vmatpush.msra.mxu0 0.0
    %720 = vmatpush.msra.mxu0 0.0
    %721 = vmatpush.msra.mxu0 0.0
    %722 = vmatpush.msra.mxu0 0.0
    %723 = vmatpush.msra.mxu0 0.0
    %724 = vmatpush.msra.mxu0 0.0
    %725 = vmatpush.msra.mxu0 0.0
    %726 = vmatpush.msra.mxu0 0.0
    %727 = vmatpush.msra.mxu0 0.0
    %728 = vmatpush.msra.mxu0 0.0
    %729 = vmatpush.msra.mxu0 %v708
    %730 = vmatpush.msra.mxu0 %v707
    %731 = vmatmul.f32.gmra.mxu0 %v710
    %v732 = vpop.f32.mrf.mxu0
    %v733 = vadd.f32 0.0, %v732
    %734 = vmatmul.f32.gmra.mxu0 %v713
    %v735 = vpop.f32.mrf.mxu0
    %v736 = vadd.f32 0.0, %v735
    %737 = vdwg.mxu0
    %v738 = vadd.f32 %v647, %v733
    %v739 = vadd.f32 %v648, %v736
    %v740 = vld [vmem:[%s31] sm:$0xff]
    %v741 = vld [vmem:[%s31 + $0x8] sm:$0xff]
    %v742 = vld [vmem:[%s31 + $0x10] sm:$0xff]
    %v743 = vld [vmem:[%s31 + $0x18] sm:$0xff]
    %v744 = vld [vmem:[%s33] sm:$0x1]
    %v746 = vperm.slane %v744, 0
    %v749 = vsel %vm129, %v738, 0
    %v752 = vsel %vm129, %v739, 0
    %754 = vmatpush.msra.mxu0 0.0
    %755 = vmatpush.msra.mxu0 0.0
    %756 = vmatpush.msra.mxu0 0.0
    %757 = vmatpush.msra.mxu0 0.0
    %758 = vmatpush.msra.mxu0 0.0
    %759 = vmatpush.msra.mxu0 0.0
    %760 = vmatpush.msra.mxu0 0.0
    %761 = vmatpush.msra.mxu0 0.0
    %762 = vmatpush.msra.mxu0 0.0
    %763 = vmatpush.msra.mxu0 0.0
    %764 = vmatpush.msra.mxu0 0.0
    %765 = vmatpush.msra.mxu0 0.0
    %766 = vmatpush.msra.mxu0 %v743
    %767 = vmatpush.msra.mxu0 %v742
    %768 = vmatpush.msra.mxu0 %v741
    %769 = vmatpush.msra.mxu0 %v740
    %770 = vmatmul.f32.gmra.mxu0 %v749
    %v771 = vpop.f32.mrf.mxu0
    %v772 = vadd.f32 %v746, %v771
    %773 = vmatmul.f32.gmra.mxu0 %v752
    %v774 = vpop.f32.mrf.mxu0
    %v775 = vadd.f32 %v746, %v774
    %776 = vdwg.mxu0
    %v777 = vadd.f32 %v266, %v772
    %v778 = vadd.f32 %v267, %v775
    %v779 = vld [vmem:[%s35] sm:$0x1]
    %v780 = vld [vmem:[%s37] sm:$0x1]
    %v781 = vsel %vm129, %v777, 0.0
    %782 = vadd.xlane.f32.xlu0 %v781
    %v783 = vpop.xlane.xlu0 %782
    %v784 = vsel %vm129, %v778, 0.0
    %785 = vadd.xlane.f32.xlu0 %v784
    %v786 = vpop.xlane.xlu0 %785
    %v787 = vmul.f32 %v783, %v219
    %v788 = vmul.f32 %v786, %v219
    %v789 = vsub.f32 %v777, %v787
    %v790 = vsub.f32 %v778, %v788
    %v791 = vmul.f32 %v789, %v789
    %v792 = vmul.f32 %v790, %v790
    %v793 = vsel %vm129, %v791, 0.0
    %794 = vadd.xlane.f32.xlu0 %v793
    %v795 = vpop.xlane.xlu0 %794
    %v796 = vsel %vm129, %v792, 0.0
    %797 = vadd.xlane.f32.xlu0 %v796
    %v798 = vpop.xlane.xlu0 %797
    %v799 = vmul.f32 %v795, %v219
    %v800 = vmul.f32 %v798, %v219
    %v801 = vadd.f32 %v799, 1e-12
    %v802 = vadd.f32 %v800, 1e-12
    %v803 = vrsqrt.pop %v801
    %v804 = vmul.f32 %v803, %v801
    %v805 = vmul.f32 %v804, %v803
    %v806 = vmul.f32 0.5, %v805
    %v807 = vsub.f32 1.5, %v806
    %v808 = vmul.f32 %v803, %v807
    %vm809 = vweird.f32 %v801
    %vm810 = vweird.f32 %v803
    %vm811 = vmor %vm809, %vm810
    %v812 = vsel %vm811, %v803, %v808
    %v813 = vrsqrt.pop %v802
    %v814 = vmul.f32 %v813, %v802
    %v815 = vmul.f32 %v814, %v813
    %v816 = vmul.f32 0.5, %v815
    %v817 = vsub.f32 1.5, %v816
    %v818 = vmul.f32 %v813, %v817
    %vm819 = vweird.f32 %v802
    %vm820 = vweird.f32 %v813
    %vm821 = vmor %vm819, %vm820
    %v822 = vsel %vm821, %v813, %v818
    %v823 = vmul.f32 %v789, %v812
    %v824 = vmul.f32 %v790, %v822
    %v826 = vperm.slane %v779, 0
    %v828 = vmul.f32 %v823, %v826
    %v829 = vmul.f32 %v824, %v826
    %v831 = vperm.slane %v780, 0
    %v833 = vadd.f32 %v828, %v831
    %v834 = vadd.f32 %v829, %v831
    %v835 = vld [vmem:[%s39] sm:$0xff]
    %v836 = vld [vmem:[%s39 + $0x8] sm:$0xff]
    %v837 = vld [vmem:[%s39 + $0x10] sm:$0xff]
    %v838 = vld [vmem:[%s39 + $0x18] sm:$0xff]
    %v839 = vld [vmem:[%s41] sm:$0x1]
    %v841 = vperm.slane %v839, 0
    %v844 = vsel %vm129, %v833, 0
    %v847 = vsel %vm129, %v834, 0
    %849 = vmatpush.msra.mxu0 0.0
    %850 = vmatpush.msra.mxu0 0.0
    %851 = vmatpush.msra.mxu0 0.0
    %852 = vmatpush.msra.mxu0 0.0
    %853 = vmatpush.msra.mxu0 0.0
    %854 = vmatpush.msra.mxu0 0.0
    %855 = vmatpush.msra.mxu0 0.0
    %856 = vmatpush.msra.mxu0 0.0
    %857 = vmatpush.msra.mxu0 0.0
    %858 = vmatpush.msra.mxu0 0.0
    %859 = vmatpush.msra.mxu0 0.0
    %860 = vmatpush.msra.mxu0 0.0
    %861 = vmatpush.msra.mxu0 %v838
    %862 = vmatpush.msra.mxu0 %v837
    %863 = vmatpush.msra.mxu0 %v836
    %864 = vmatpush.msra.mxu0 %v835
    %865 = vmatmul.f32.gmra.mxu0 %v844
    %v866 = vpop.f32.mrf.mxu0
    %v867 = vadd.f32 %v841, %v866
    %868 = vmatmul.f32.gmra.mxu0 %v847
    %v869 = vpop.f32.mrf.mxu0
    %v870 = vadd.f32 %v841, %v869
    %871 = vdwg.mxu0
    %v872 = vmul.f32 %v867, 0.5
    %v873 = vmul.f32 %v870, 0.5
    %v874 = vmul.f32 %v867, 0.044715
    %v875 = vmul.f32 %v870, 0.044715
    %v876 = vmul.f32 %v874, %v867
    %v877 = vmul.f32 %v875, %v870
    %v878 = vmul.f32 %v876, %v867
    %v879 = vmul.f32 %v877, %v870
    %v880 = vadd.f32 %v867, %v878
    %v881 = vadd.f32 %v870, %v879
    %v882 = vmul.f32 %v880, 0.7978846
    %v883 = vmul.f32 %v881, 0.7978846
    %v884 = vtanh.pop %v882
    %v885 = vtanh.pop %v883
    %v886 = vadd.f32 %v884, 1.0
    %v887 = vadd.f32 %v885, 1.0
    %v888 = vmul.f32 %v872, %v886
    %v889 = vmul.f32 %v873, %v887
    %v890 = vld [vmem:[%s43] sm:$0xff]
    %v891 = vld [vmem:[%s43 + $0x8] sm:$0xff]
    %v892 = vld [vmem:[%s43 + $0x10] sm:$0xff]
    %v893 = vld [vmem:[%s43 + $0x18] sm:$0xff]
    %v894 = vld [vmem:[%s43 + $0x20] sm:$0xff]
    %v895 = vld [vmem:[%s43 + $0x28] sm:$0xff]
    %v896 = vld [vmem:[%s43 + $0x30] sm:$0xff]
    %v897 = vld [vmem:[%s43 + $0x38] sm:$0xff]
    %v898 = vld [vmem:[%s45] sm:$0x1]
    %v900 = vperm.slane %v898, 0
    %v903 = vsel %vm171, %v888, 0
    %v906 = vsel %vm171, %v889, 0
    %908 = vmatpush.msra.mxu0 0.0
    %909 = vmatpush.msra.mxu0 0.0
    %910 = vmatpush.msra.mxu0 0.0
    %911 = vmatpush.msra.mxu0 0.0
    %912 = vmatpush.msra.mxu0 0.0
    %913 = vmatpush.msra.mxu0 0.0
    %914 = vmatpush.msra.mxu0 0.0
    %915 = vmatpush.msra.mxu0 0.0
    %916 = vmatpush.msra.mxu0 %v897
    %917 = vmatpush.msra.mxu0 %v896
    %918 = vmatpush.msra.mxu0 %v895
    %919 = vmatpush.msra.mxu0 %v894
    %920 = vmatpush.msra.mxu0 %v893
    %921 = vmatpush.msra.mxu0 %v892
    %922 = vmatpush.msra.mxu0 %v891
    %923 = vmatpush.msra.mxu0 %v890
    %924 = vmatmul.f32.gmra.mxu0 %v903
    %v925 = vpop.f32.mrf.mxu0
    %v926 = vadd.f32 %v900, %v925
    %927 = vmatmul.f32.gmra.mxu0 %v906
    %v928 = vpop.f32.mrf.mxu0
    %v929 = vadd.f32 %v900, %v928
    %930 = vdwg.mxu0
    %v931 = vadd.f32 %v833, %v926
    %v932 = vadd.f32 %v834, %v929
    %v933 = vld [vmem:[%s47] sm:$0x1]
    %v934 = vld [vmem:[%s49] sm:$0x1]
    %v935 = vsel %vm129, %v931, 0.0
    %936 = vadd.xlane.f32.xlu0 %v935
    %v937 = vpop.xlane.xlu0 %936
    %v938 = vsel %vm129, %v932, 0.0
    %939 = vadd.xlane.f32.xlu0 %v938
    %v940 = vpop.xlane.xlu0 %939
    %v941 = vmul.f32 %v937, %v219
    %v942 = vmul.f32 %v940, %v219
    %v943 = vsub.f32 %v931, %v941
    %v944 = vsub.f32 %v932, %v942
    %v945 = vmul.f32 %v943, %v943
    %v946 = vmul.f32 %v944, %v944
    %v947 = vsel %vm129, %v945, 0.0
    %948 = vadd.xlane.f32.xlu0 %v947
    %v949 = vpop.xlane.xlu0 %948
    %v950 = vsel %vm129, %v946, 0.0
    %951 = vadd.xlane.f32.xlu0 %v950
    %v952 = vpop.xlane.xlu0 %951
    %v953 = vmul.f32 %v949, %v219
    %v954 = vmul.f32 %v952, %v219
    %v955 = vadd.f32 %v953, 1e-12
    %v956 = vadd.f32 %v954, 1e-12
    %v957 = vrsqrt.pop %v955
    %v958 = vmul.f32 %v957, %v955
    %v959 = vmul.f32 %v958, %v957
    %v960 = vmul.f32 0.5, %v959
    %v961 = vsub.f32 1.5, %v960
    %v962 = vmul.f32 %v957, %v961
    %vm963 = vweird.f32 %v955
    %vm964 = vweird.f32 %v957
    %vm965 = vmor %vm963, %vm964
    %v966 = vsel %vm965, %v957, %v962
    %v967 = vrsqrt.pop %v956
    %v968 = vmul.f32 %v967, %v956
    %v969 = vmul.f32 %v968, %v967
    %v970 = vmul.f32 0.5, %v969
    %v971 = vsub.f32 1.5, %v970
    %v972 = vmul.f32 %v967, %v971
    %vm973 = vweird.f32 %v956
    %vm974 = vweird.f32 %v967
    %vm975 = vmor %vm973, %vm974
    %v976 = vsel %vm975, %v967, %v972
    %v977 = vmul.f32 %v943, %v966
    %v978 = vmul.f32 %v944, %v976
    %v980 = vperm.slane %v933, 0
    %v982 = vmul.f32 %v977, %v980
    %v983 = vmul.f32 %v978, %v980
    %v985 = vperm.slane %v934, 0
    %v987 = vadd.f32 %v982, %v985
    %v988 = vadd.f32 %v983, %v985
    %s989 = scalar_lea.vmem %s19, 32
    %v990 = vld [vmem:[%s989] sm:$0xff]
    %v991 = vld [vmem:[%s989 + $0x8] sm:$0xff]
    %v992 = vld [vmem:[%s989 + $0x10] sm:$0xff]
    %v993 = vld [vmem:[%s989 + $0x18] sm:$0xff]
    %s994 = scalar_lea.vmem %s21, 1
    %v995 = vld [vmem:[%s994] sm:$0x1]
    %v997 = vperm.slane %v995, 0
    %v1000 = vsel %vm129, %v987, 0
    %v1003 = vsel %vm129, %v988, 0
    %1005 = vmatpush.msra.mxu0 0.0
    %1006 = vmatpush.msra.mxu0 0.0
    %1007 = vmatpush.msra.mxu0 0.0
    %1008 = vmatpush.msra.mxu0 0.0
    %1009 = vmatpush.msra.mxu0 0.0
    %1010 = vmatpush.msra.mxu0 0.0
    %1011 = vmatpush.msra.mxu0 0.0
    %1012 = vmatpush.msra.mxu0 0.0
    %1013 = vmatpush.msra.mxu0 0.0
    %1014 = vmatpush.msra.mxu0 0.0
    %1015 = vmatpush.msra.mxu0 0.0
    %1016 = vmatpush.msra.mxu0 0.0
    %1017 = vmatpush.msra.mxu0 %v993
    %1018 = vmatpush.msra.mxu0 %v992
    %1019 = vmatpush.msra.mxu0 %v991
    %1020 = vmatpush.msra.mxu0 %v990
    %1021 = vmatmul.f32.gmra.mxu0 %v1000
    %v1022 = vpop.f32.mrf.mxu0
    %v1023 = vadd.f32 %v997, %v1022
    %1024 = vmatmul.f32.gmra.mxu0 %v1003
    %v1025 = vpop.f32.mrf.mxu0
    %v1026 = vadd.f32 %v997, %v1025
    %1027 = vdwg.mxu0
    %v1028 = vmul.f32 %v1023, 0.35355338
    %v1029 = vmul.f32 %v1026, 0.35355338
    %s1030 = scalar_lea.vmem %s23, 32
    %v1031 = vld [vmem:[%s1030] sm:$0xff]
    %v1032 = vld [vmem:[%s1030 + $0x8] sm:$0xff]
    %v1033 = vld [vmem:[%s1030 + $0x10] sm:$0xff]
    %v1034 = vld [vmem:[%s1030 + $0x18] sm:$0xff]
    %s1035 = scalar_lea.vmem %s25, 1
    %v1036 = vld [vmem:[%s1035] sm:$0x1]
    %v1038 = vperm.slane %v1036, 0
    %1040 = vmatpush.msra.mxu0 0.0
    %1041 = vmatpush.msra.mxu0 0.0
    %1042 = vmatpush.msra.mxu0 0.0
    %1043 = vmatpush.msra.mxu0 0.0
    %1044 = vmatpush.msra.mxu0 0.0
    %1045 = vmatpush.msra.mxu0 0.0
    %1046 = vmatpush.msra.mxu0 0.0
    %1047 = vmatpush.msra.mxu0 0.0
    %1048 = vmatpush.msra.mxu0 0.0
    %1049 = vmatpush.msra.mxu0 0.0
    %1050 = vmatpush.msra.mxu0 0.0
    %1051 = vmatpush.msra.mxu0 0.0
    %1052 = vmatpush.msra.mxu0 %v1034
    %1053 = vmatpush.msra.mxu0 %v1033
    %1054 = vmatpush.msra.mxu0 %v1032
    %1055 = vmatpush.msra.mxu0 %v1031
    %1056 = vmatmul.f32.gmra.mxu0 %v1000
    %v1057 = vpop.f32.mrf.mxu0
    %v1058 = vadd.f32 %v1038, %v1057
    %1059 = vmatmul.f32.gmra.mxu0 %v1003
    %v1060 = vpop.f32.mrf.mxu0
    %v1061 = vadd.f32 %v1038, %v1060
    %1062 = vdwg.mxu0
    %s1063 = scalar_lea.vmem %s27, 32
    %v1064 = vld [vmem:[%s1063] sm:$0xff]
    %v1065 = vld [vmem:[%s1063 + $0x8] sm:$0xff]
    %v1066 = vld [vmem:[%s1063 + $0x10] sm:$0xff]
    %v1067 = vld [vmem:[%s1063 + $0x18] sm:$0xff]
    %s1068 = scalar_lea.vmem %s29, 1
    %v1069 = vld [vmem:[%s1068] sm:$0x1]
    %v1071 = vperm.slane %v1069, 0
    %1073 = vmatpush.msra.mxu0 0.0
    %1074 = vmatpush.msra.mxu0 0.0
    %1075 = vmatpush.msra.mxu0 0.0
    %1076 = vmatpush.msra.mxu0 0.0
    %1077 = vmatpush.msra.mxu0 0.0
    %1078 = vmatpush.msra.mxu0 0.0
    %1079 = vmatpush.msra.mxu0 0.0
    %1080 = vmatpush.msra.mxu0 0.0
    %1081 = vmatpush.msra.mxu0 0.0
    %1082 = vmatpush.msra.mxu0 0.0
    %1083 = vmatpush.msra.mxu0 0.0
    %1084 = vmatpush.msra.mxu0 0.0
    %1085 = vmatpush.msra.mxu0 %v1067
    %1086 = vmatpush.msra.mxu0 %v1066
    %1087 = vmatpush.msra.mxu0 %v1065
    %1088 = vmatpush.msra.mxu0 %v1064
    %1089 = vmatmul.f32.gmra.mxu0 %v1000
    %v1090 = vpop.f32.mrf.mxu0
    %v1091 = vadd.f32 %v1071, %v1090
    %1092 = vmatmul.f32.gmra.mxu0 %v1003
    %v1093 = vpop.f32.mrf.mxu0
    %v1094 = vadd.f32 %v1071, %v1093
    %1095 = vdwg.mxu0
    %v1096 = vmul.f32 %v1028, %v377
    %v1097 = vmul.f32 %v1029, %v377
    %v1099 = vsel %vm129, %v1096, 0
    %v1102 = vsel %vm129, %v1097, 0
    %v1105 = vsel %vm129, %v1058, 0
    %v1108 = vsel %vm129, %v1061, 0
    %1110 = vmatpush.xpose.msra.mxu0 0.0
    %1111 = vmatpush.xpose.msra.mxu0 0.0
    %1112 = vmatpush.xpose.msra.mxu0 0.0
    %1113 = vmatpush.xpose.msra.mxu0 0.0
    %1114 = vmatpush.xpose.msra.mxu0 0.0
    %1115 = vmatpush.xpose.msra.mxu0 0.0
    %1116 = vmatpush.xpose.msra.mxu0 0.0
    %1117 = vmatpush.xpose.msra.mxu0 0.0
    %1118 = vmatpush.xpose.msra.mxu0 0.0
    %1119 = vmatpush.xpose.msra.mxu0 0.0
    %1120 = vmatpush.xpose.msra.mxu0 0.0
    %1121 = vmatpush.xpose.msra.mxu0 0.0
    %1122 = vmatpush.xpose.msra.mxu0 0.0
    %1123 = vmatpush.xpose.msra.mxu0 0.0
    %1124 = vmatpush.xpose.msra.mxu0 %v1108
    %1125 = vmatpush.xpose.msra.mxu0 %v1105
    %1126 = vmatmul.f32.gmra.mxu0 %v1099
    %v1127 = vpop.f32.mrf.mxu0
    %v1128 = vadd.f32 %v268, %v1127
    %1129 = vmatmul.f32.gmra.mxu0 %v1102
    %v1130 = vpop.f32.mrf.mxu0
    %v1131 = vadd.f32 %v269, %v1130
    %1132 = vdwg.mxu0
    %v1133 = vsel %vm415, %v1128, -inf
    %1134 = vmax.xlane.f32.xlu0 %v1133
    %v1135 = vpop.xlane.xlu0 %1134
    %v1136 = vsel %vm415, %v1131, -inf
    %1137 = vmax.xlane.f32.xlu0 %v1136
    %v1138 = vpop.xlane.xlu0 %1137
    %v1139 = vsub.f32 %v1128, %v1135
    %v1140 = vsub.f32 %v1131, %v1138
    %v1141 = vmul.f32 %v1139, 1.442695
    %v1142 = vpow.pop %v1141
    %v1143 = vmul.f32 %v1140, 1.442695
    %v1144 = vpow.pop %v1143
    %v1145 = vsel %vm415, %v1142, 0.0
    %1146 = vadd.xlane.f32.xlu0 %v1145
    %v1147 = vpop.xlane.xlu0 %1146
    %v1148 = vsel %vm415, %v1144, 0.0
    %1149 = vadd.xlane.f32.xlu0 %v1148
    %v1150 = vpop.xlane.xlu0 %1149
    %v1151 = vrcp.pop %v1147
    %v1152 = vrcp.pop %v1150
    %v1153 = vmul.f32 %v1142, %v1151
    %v1154 = vmul.f32 %v1144, %v1152
    %v1155 = vmul.f32 %v1091, %v377
    %v1156 = vmul.f32 %v1094, %v377
    %v1157 = vmul.f32 %v1028, %v444
    %v1158 = vmul.f32 %v1029, %v444
    %v1160 = vsel %vm129, %v1157, 0
    %v1163 = vsel %vm129, %v1158, 0
    %1165 = vmatpush.xpose.msra.mxu0 0.0
    %1166 = vmatpush.xpose.msra.mxu0 0.0
    %1167 = vmatpush.xpose.msra.mxu0 0.0
    %1168 = vmatpush.xpose.msra.mxu0 0.0
    %1169 = vmatpush.xpose.msra.mxu0 0.0
    %1170 = vmatpush.xpose.msra.mxu0 0.0
    %1171 = vmatpush.xpose.msra.mxu0 0.0
    %1172 = vmatpush.xpose.msra.mxu0 0.0
    %1173 = vmatpush.xpose.msra.mxu0 0.0
    %1174 = vmatpush.xpose.msra.mxu0 0.0
    %1175 = vmatpush.xpose.msra.mxu0 0.0
    %1176 = vmatpush.xpose.msra.mxu0 0.0
    %1177 = vmatpush.xpose.msra.mxu0 0.0
    %1178 = vmatpush.xpose.msra.mxu0 0.0
    %1179 = vmatpush.xpose.msra.mxu0 %v1108
    %1180 = vmatpush.xpose.msra.mxu0 %v1105
    %1181 = vmatmul.f32.gmra.mxu0 %v1160
    %v1182 = vpop.f32.mrf.mxu0
    %v1183 = vadd.f32 %v268, %v1182
    %1184 = vmatmul.f32.gmra.mxu0 %v1163
    %v1185 = vpop.f32.mrf.mxu0
    %v1186 = vadd.f32 %v269, %v1185
    %1187 = vdwg.mxu0
    %v1188 = vsel %vm415, %v1183, -inf
    %1189 = vmax.xlane.f32.xlu0 %v1188
    %v1190 = vpop.xlane.xlu0 %1189
    %v1191 = vsel %vm415, %v1186, -inf
    %1192 = vmax.xlane.f32.xlu0 %v1191
    %v1193 = vpop.xlane.xlu0 %1192
    %v1194 = vsub.f32 %v1183, %v1190
    %v1195 = vsub.f32 %v1186, %v1193
    %v1196 = vmul.f32 %v1194, 1.442695
    %v1197 = vpow.pop %v1196
    %v1198 = vmul.f32 %v1195, 1.442695
    %v1199 = vpow.pop %v1198
    %v1200 = vsel %vm415, %v1197, 0.0
    %1201 = vadd.xlane.f32.xlu0 %v1200
    %v1202 = vpop.xlane.xlu0 %1201
    %v1203 = vsel %vm415, %v1199, 0.0
    %1204 = vadd.xlane.f32.xlu0 %v1203
    %v1205 = vpop.xlane.xlu0 %1204
    %v1206 = vrcp.pop %v1202
    %v1207 = vrcp.pop %v1205
    %v1208 = vmul.f32 %v1197, %v1206
    %v1209 = vmul.f32 %v1199, %v1207
    %v1210 = vmul.f32 %v1091, %v444
    %v1211 = vmul.f32 %v1094, %v444
    %v1213 = vsel %vm415, %v1208, 0
    %v1216 = vsel %vm415, %v1209, 0
    %1218 = vmatpush.msra.mxu0 0.0
    %1219 = vmatpush.msra.mxu0 0.0
    %1220 = vmatpush.msra.mxu0 0.0
    %1221 = vmatpush.msra.mxu0 0.0
    %1222 = vmatpush.msra.mxu0 0.0
    %1223 = vmatpush.msra.mxu0 0.0
    %1224 = vmatpush.msra.mxu0 0.0
    %1225 = vmatpush.msra.mxu0 0.0
    %1226 = vmatpush.msra.mxu0 0.0
    %1227 = vmatpush.msra.mxu0 0.0
    %1228 = vmatpush.msra.mxu0 0.0
    %1229 = vmatpush.msra.mxu0 0.0
    %1230 = vmatpush.msra.mxu0 0.0
    %1231 = vmatpush.msra.mxu0 0.0
    %1232 = vmatpush.msra.mxu0 %v1211
    %1233 = vmatpush.msra.mxu0 %v1210
    %1234 = vmatmul.f32.gmra.mxu0 %v1213
    %v1235 = vpop.f32.mrf.mxu0
    %v1236 = vadd.f32 0.0, %v1235
    %1237 = vmatmul.f32.gmra.mxu0 %v1216
    %v1238 = vpop.f32.mrf.mxu0
    %v1239 = vadd.f32 0.0, %v1238
    %1240 = vdwg.mxu0
    %v1242 = vsel %vm415, %v1153, 0
    %v1245 = vsel %vm415, %v1154, 0
    %1247 = vmatpush.msra.mxu0 0.0
    %1248 = vmatpush.msra.mxu0 0.0
    %1249 = vmatpush.msra.mxu0 0.0
    %1250 = vmatpush.msra.mxu0 0.0
    %1251 = vmatpush.msra.mxu0 0.0
    %1252 = vmatpush.msra.mxu0 0.0
    %1253 = vmatpush.msra.mxu0 0.0
    %1254 = vmatpush.msra.mxu0 0.0
    %1255 = vmatpush.msra.mxu0 0.0
    %1256 = vmatpush.msra.mxu0 0.0
    %1257 = vmatpush.msra.mxu0 0.0
    %1258 = vmatpush.msra.mxu0 0.0
    %1259 = vmatpush.msra.mxu0 0.0
    %1260 = vmatpush.msra.mxu0 0.0
    %1261 = vmatpush.msra.mxu0 %v1156
    %1262 = vmatpush.msra.mxu0 %v1155
    %1263 = vmatmul.f32.gmra.mxu0 %v1242
    %v1264 = vpop.f32.mrf.mxu0
    %v1265 = vadd.f32 %v1236, %v1264
    %1266 = vmatmul.f32.gmra.mxu0 %v1245
    %v1267 = vpop.f32.mrf.mxu0
    %v1268 = vadd.f32 %v1239, %v1267
    %1269 = vdwg.mxu0
    %v1270 = vmul.f32 %v1028, %v562
    %v1271 = vmul.f32 %v1029, %v562
    %v1273 = vsel %vm129, %v1270, 0
    %v1276 = vsel %vm129, %v1271, 0
    %1278 = vmatpush.xpose.msra.mxu0 0.0
    %1279 = vmatpush.xpose.msra.mxu0 0.0
    %1280 = vmatpush.xpose.msra.mxu0 0.0
    %1281 = vmatpush.xpose.msra.mxu0 0.0
    %1282 = vmatpush.xpose.msra.mxu0 0.0
    %1283 = vmatpush.xpose.msra.mxu0 0.0
    %1284 = vmatpush.xpose.msra.mxu0 0.0
    %1285 = vmatpush.xpose.msra.mxu0 0.0
    %1286 = vmatpush.xpose.msra.mxu0 0.0
    %1287 = vmatpush.xpose.msra.mxu0 0.0
    %1288 = vmatpush.xpose.msra.mxu0 0.0
    %1289 = vmatpush.xpose.msra.mxu0 0.0
    %1290 = vmatpush.xpose.msra.mxu0 0.0
    %1291 = vmatpush.xpose.msra.mxu0 0.0
    %1292 = vmatpush.xpose.msra.mxu0 %v1108
    %1293 = vmatpush.xpose.msra.mxu0 %v1105
    %1294 = vmatmul.f32.gmra.mxu0 %v1273
    %v1295 = vpop.f32.mrf.mxu0
    %v1296 = vadd.f32 %v268, %v1295
    %1297 = vmatmul.f32.gmra.mxu0 %v1276
    %v1298 = vpop.f32.mrf.mxu0
    %v1299 = vadd.f32 %v269, %v1298
    %1300 = vdwg.mxu0
    %v1301 = vsel %vm415, %v1296, -inf
    %1302 = vmax.xlane.f32.xlu0 %v1301
    %v1303 = vpop.xlane.xlu0 %1302
    %v1304 = vsel %vm415, %v1299, -inf
    %1305 = vmax.xlane.f32.xlu0 %v1304
    %v1306 = vpop.xlane.xlu0 %1305
    %v1307 = vsub.f32 %v1296, %v1303
    %v1308 = vsub.f32 %v1299, %v1306
    %v1309 = vmul.f32 %v1307, 1.442695
    %v1310 = vpow.pop %v1309
    %v1311 = vmul.f32 %v1308, 1.442695
    %v1312 = vpow.pop %v1311
    %v1313 = vsel %vm415, %v1310, 0.0
    %1314 = vadd.xlane.f32.xlu0 %v1313
    %v1315 = vpop.xlane.xlu0 %1314
    %v1316 = vsel %vm415, %v1312, 0.0
    %1317 = vadd.xlane.f32.xlu0 %v1316
    %v1318 = vpop.xlane.xlu0 %1317
    %v1319 = vrcp.pop %v1315
    %v1320 = vrcp.pop %v1318
    %v1321 = vmul.f32 %v1310, %v1319
    %v1322 = vmul.f32 %v1312, %v1320
    %v1323 = vmul.f32 %v1091, %v562
    %v1324 = vmul.f32 %v1094, %v562
    %v1326 = vsel %vm415, %v1321, 0
    %v1329 = vsel %vm415, %v1322, 0
    %1331 = vmatpush.msra.mxu0 0.0
    %1332 = vmatpush.msra.mxu0 0.0
    %1333 = vmatpush.msra.mxu0 0.0
    %1334 = vmatpush.msra.mxu0 0.0
    %1335 = vmatpush.msra.mxu0 0.0
    %1336 = vmatpush.msra.mxu0 0.0
    %1337 = vmatpush.msra.mxu0 0.0
    %1338 = vmatpush.msra.mxu0 0.0
    %1339 = vmatpush.msra.mxu0 0.0
    %1340 = vmatpush.msra.mxu0 0.0
    %1341 = vmatpush.msra.mxu0 0.0
    %1342 = vmatpush.msra.mxu0 0.0
    %1343 = vmatpush.msra.mxu0 0.0
    %1344 = vmatpush.msra.mxu0 0.0
    %1345 = vmatpush.msra.mxu0 %v1324
    %1346 = vmatpush.msra.mxu0 %v1323
    %1347 = vmatmul.f32.gmra.mxu0 %v1326
    %v1348 = vpop.f32.mrf.mxu0
    %v1349 = vadd.f32 0.0, %v1348
    %1350 = vmatmul.f32.gmra.mxu0 %v1329
    %v1351 = vpop.f32.mrf.mxu0
    %v1352 = vadd.f32 0.0, %v1351
    %1353 = vdwg.mxu0
    %v1354 = vadd.f32 %v1265, %v1349
    %v1355 = vadd.f32 %v1268, %v1352
    %v1356 = vmul.f32 %v1028, %v653
    %v1357 = vmul.f32 %v1029, %v653
    %v1359 = vsel %vm129, %v1356, 0
    %v1362 = vsel %vm129, %v1357, 0
    %1364 = vmatpush.xpose.msra.mxu0 0.0
    %1365 = vmatpush.xpose.msra.mxu0 0.0
    %1366 = vmatpush.xpose.msra.mxu0 0.0
    %1367 = vmatpush.xpose.msra.mxu0 0.0
    %1368 = vmatpush.xpose.msra.mxu0 0.0
    %1369 = vmatpush.xpose.msra.mxu0 0.0
    %1370 = vmatpush.xpose.msra.mxu0 0.0
    %1371 = vmatpush.xpose.msra.mxu0 0.0
    %1372 = vmatpush.xpose.msra.mxu0 0.0
    %1373 = vmatpush.xpose.msra.mxu0 0.0
    %1374 = vmatpush.xpose.msra.mxu0 0.0
    %1375 = vmatpush.xpose.msra.mxu0 0.0
    %1376 = vmatpush.xpose.msra.mxu0 0.0
    %1377 = vmatpush.xpose.msra.mxu0 0.0
    %1378 = vmatpush.xpose.msra.mxu0 %v1108
    %1379 = vmatpush.xpose.msra.mxu0 %v1105
    %1380 = vmatmul.f32.gmra.mxu0 %v1359
    %v1381 = vpop.f32.mrf.mxu0
    %v1382 = vadd.f32 %v268, %v1381
    %1383 = vmatmul.f32.gmra.mxu0 %v1362
    %v1384 = vpop.f32.mrf.mxu0
    %v1385 = vadd.f32 %v269, %v1384
    %1386 = vdwg.mxu0
    %v1387 = vsel %vm415, %v1382, -inf
    %1388 = vmax.xlane.f32.xlu0 %v1387
    %v1389 = vpop.xlane.xlu0 %1388
    %v1390 = vsel %vm415, %v1385, -inf
    %1391 = vmax.xlane.f32.xlu0 %v1390
    %v1392 = vpop.xlane.xlu0 %1391
    %v1393 = vsub.f32 %v1382, %v1389
    %v1394 = vsub.f32 %v1385, %v1392
    %v1395 = vmul.f32 %v1393, 1.442695
    %v1396 = vpow.pop %v1395
    %v1397 = vmul.f32 %v1394, 1.442695
    %v1398 = vpow.pop %v1397
    %v1399 = vsel %vm415, %v1396, 0.0
    %1400 = vadd.xlane.f32.xlu0 %v1399
    %v1401 = vpop.xlane.xlu0 %1400
    %v1402 = vsel %vm415, %v1398, 0.0
    %1403 = vadd.xlane.f32.xlu0 %v1402
    %v1404 = vpop.xlane.xlu0 %1403
    %v1405 = vrcp.pop %v1401
    %v1406 = vrcp.pop %v1404
    %v1407 = vmul.f32 %v1396, %v1405
    %v1408 = vmul.f32 %v1398, %v1406
    %v1409 = vmul.f32 %v1091, %v653
    %v1410 = vmul.f32 %v1094, %v653
    %v1412 = vsel %vm415, %v1407, 0
    %v1415 = vsel %vm415, %v1408, 0
    %1417 = vmatpush.msra.mxu0 0.0
    %1418 = vmatpush.msra.mxu0 0.0
    %1419 = vmatpush.msra.mxu0 0.0
    %1420 = vmatpush.msra.mxu0 0.0
    %1421 = vmatpush.msra.mxu0 0.0
    %1422 = vmatpush.msra.mxu0 0.0
    %1423 = vmatpush.msra.mxu0 0.0
    %1424 = vmatpush.msra.mxu0 0.0
    %1425 = vmatpush.msra.mxu0 0.0
    %1426 = vmatpush.msra.mxu0 0.0
    %1427 = vmatpush.msra.mxu0 0.0
    %1428 = vmatpush.msra.mxu0 0.0
    %1429 = vmatpush.msra.mxu0 0.0
    %1430 = vmatpush.msra.mxu0 0.0
    %1431 = vmatpush.msra.mxu0 %v1410
    %1432 = vmatpush.msra.mxu0 %v1409
    %1433 = vmatmul.f32.gmra.mxu0 %v1412
    %v1434 = vpop.f32.mrf.mxu0
    %v1435 = vadd.f32 0.0, %v1434
    %1436 = vmatmul.f32.gmra.mxu0 %v1415
    %v1437 = vpop.f32.mrf.mxu0
    %v1438 = vadd.f32 0.0, %v1437
    %1439 = vdwg.mxu0
    %v1440 = vadd.f32 %v1354, %v1435
    %v1441 = vadd.f32 %v1355, %v1438
    %s1442 = scalar_lea.vmem %s31, 32
    %v1443 = vld [vmem:[%s1442] sm:$0xff]
    %v1444 = vld [vmem:[%s1442 + $0x8] sm:$0xff]
    %v1445 = vld [vmem:[%s1442 + $0x10] sm:$0xff]
    %v1446 = vld [vmem:[%s1442 + $0x18] sm:$0xff]
    %s1447 = scalar_lea.vmem %s33, 1
    %v1448 = vld [vmem:[%s1447] sm:$0x1]
    %v1450 = vperm.slane %v1448, 0
    %v1453 = vsel %vm129, %v1440, 0
    %v1456 = vsel %vm129, %v1441, 0
    %1458 = vmatpush.msra.mxu0 0.0
    %1459 = vmatpush.msra.mxu0 0.0
    %1460 = vmatpush.msra.mxu0 0.0
    %1461 = vmatpush.msra.mxu0 0.0
    %1462 = vmatpush.msra.mxu0 0.0
    %1463 = vmatpush.msra.mxu0 0.0
    %1464 = vmatpush.msra.mxu0 0.0
    %1465 = vmatpush.msra.mxu0 0.0
    %1466 = vmatpush.msra.mxu0 0.0
    %1467 = vmatpush.msra.mxu0 0.0
    %1468 = vmatpush.msra.mxu0 0.0
    %1469 = vmatpush.msra.mxu0 0.0
    %1470 = vmatpush.msra.mxu0 %v1446
    %1471 = vmatpush.msra.mxu0 %v1445
    %1472 = vmatpush.msra.mxu0 %v1444
    %1473 = vmatpush.msra.mxu0 %v1443
    %1474 = vmatmul.f32.gmra.mxu0 %v1453
    %v1475 = vpop.f32.mrf.mxu0
    %v1476 = vadd.f32 %v1450, %v1475
    %1477 = vmatmul.f32.gmra.mxu0 %v1456
    %v1478 = vpop.f32.mrf.mxu0
    %v1479 = vadd.f32 %v1450, %v1478
    %1480 = vdwg.mxu0
    %v1481 = vadd.f32 %v987, %v1476
    %v1482 = vadd.f32 %v988, %v1479
    %s1483 = scalar_lea.vmem %s35, 1
    %v1484 = vld [vmem:[%s1483] sm:$0x1]
    %s1485 = scalar_lea.vmem %s37, 1
    %v1486 = vld [vmem:[%s1485] sm:$0x1]
    %v1487 = vsel %vm129, %v1481, 0.0
    %1488 = vadd.xlane.f32.xlu0 %v1487
    %v1489 = vpop.xlane.xlu0 %1488
    %v1490 = vsel %vm129, %v1482, 0.0
    %1491 = vadd.xlane.f32.xlu0 %v1490
    %v1492 = vpop.xlane.xlu0 %1491
    %v1493 = vmul.f32 %v1489, %v219
    %v1494 = vmul.f32 %v1492, %v219
    %v1495 = vsub.f32 %v1481, %v1493
    %v1496 = vsub.f32 %v1482, %v1494
    %v1497 = vmul.f32 %v1495, %v1495
    %v1498 = vmul.f32 %v1496, %v1496
    %v1499 = vsel %vm129, %v1497, 0.0
    %1500 = vadd.xlane.f32.xlu0 %v1499
    %v1501 = vpop.xlane.xlu0 %1500
    %v1502 = vsel %vm129, %v1498, 0.0
    %1503 = vadd.xlane.f32.xlu0 %v1502
    %v1504 = vpop.xlane.xlu0 %1503
    %v1505 = vmul.f32 %v1501, %v219
    %v1506 = vmul.f32 %v1504, %v219
    %v1507 = vadd.f32 %v1505, 1e-12
    %v1508 = vadd.f32 %v1506, 1e-12
    %v1509 = vrsqrt.pop %v1507
    %v1510 = vmul.f32 %v1509, %v1507
    %v1511 = vmul.f32 %v1510, %v1509
    %v1512 = vmul.f32 0.5, %v1511
    %v1513 = vsub.f32 1.5, %v1512
    %v1514 = vmul.f32 %v1509, %v1513
    %vm1515 = vweird.f32 %v1507
    %vm1516 = vweird.f32 %v1509
    %vm1517 = vmor %vm1515, %vm1516
    %v1518 = vsel %vm1517, %v1509, %v1514
    %v1519 = vrsqrt.pop %v1508
    %v1520 = vmul.f32 %v1519, %v1508
    %v1521 = vmul.f32 %v1520, %v1519
    %v1522 = vmul.f32 0.5, %v1521
    %v1523 = vsub.f32 1.5, %v1522
    %v1524 = vmul.f32 %v1519, %v1523
    %vm1525 = vweird.f32 %v1508
    %vm1526 = vweird.f32 %v1519
    %vm1527 = vmor %vm1525, %vm1526
    %v1528 = vsel %vm1527, %v1519, %v1524
    %v1529 = vmul.f32 %v1495, %v1518
    %v1530 = vmul.f32 %v1496, %v1528
    %v1532 = vperm.slane %v1484, 0
    %v1534 = vmul.f32 %v1529, %v1532
    %v1535 = vmul.f32 %v1530, %v1532
    %v1537 = vperm.slane %v1486, 0
    %v1539 = vadd.f32 %v1534, %v1537
    %v1540 = vadd.f32 %v1535, %v1537
    %s1541 = scalar_lea.vmem %s39, 32
    %v1542 = vld [vmem:[%s1541] sm:$0xff]
    %v1543 = vld [vmem:[%s1541 + $0x8] sm:$0xff]
    %v1544 = vld [vmem:[%s1541 + $0x10] sm:$0xff]
    %v1545 = vld [vmem:[%s1541 + $0x18] sm:$0xff]
    %s1546 = scalar_lea.vmem %s41, 1
    %v1547 = vld [vmem:[%s1546] sm:$0x1]
    %v1549 = vperm.slane %v1547, 0
    %v1552 = vsel %vm129, %v1539, 0
    %v1555 = vsel %vm129, %v1540, 0
    %1557 = vmatpush.msra.mxu0 0.0
    %1558 = vmatpush.msra.mxu0 0.0
    %1559 = vmatpush.msra.mxu0 0.0
    %1560 = vmatpush.msra.mxu0 0.0
    %1561 = vmatpush.msra.mxu0 0.0
    %1562 = vmatpush.msra.mxu0 0.0
    %1563 = vmatpush.msra.mxu0 0.0
    %1564 = vmatpush.msra.mxu0 0.0
    %1565 = vmatpush.msra.mxu0 0.0
    %1566 = vmatpush.msra.mxu0 0.0
    %1567 = vmatpush.msra.mxu0 0.0
    %1568 = vmatpush.msra.mxu0 0.0
    %1569 = vmatpush.msra.mxu0 %v1545
    %1570 = vmatpush.msra.mxu0 %v1544
    %1571 = vmatpush.msra.mxu0 %v1543
    %1572 = vmatpush.msra.mxu0 %v1542
    %1573 = vmatmul.f32.gmra.mxu0 %v1552
    %v1574 = vpop.f32.mrf.mxu0
    %v1575 = vadd.f32 %v1549, %v1574
    %1576 = vmatmul.f32.gmra.mxu0 %v1555
    %v1577 = vpop.f32.mrf.mxu0
    %v1578 = vadd.f32 %v1549, %v1577
    %1579 = vdwg.mxu0
    %v1580 = vmul.f32 %v1575, 0.5
    %v1581 = vmul.f32 %v1578, 0.5
    %v1582 = vmul.f32 %v1575, 0.044715
    %v1583 = vmul.f32 %v1578, 0.044715
    %v1584 = vmul.f32 %v1582, %v1575
    %v1585 = vmul.f32 %v1583, %v1578
    %v1586 = vmul.f32 %v1584, %v1575
    %v1587 = vmul.f32 %v1585, %v1578
    %v1588 = vadd.f32 %v1575, %v1586
    %v1589 = vadd.f32 %v1578, %v1587
    %v1590 = vmul.f32 %v1588, 0.7978846
    %v1591 = vmul.f32 %v1589, 0.7978846
    %v1592 = vtanh.pop %v1590
    %v1593 = vtanh.pop %v1591
    %v1594 = vadd.f32 %v1592, 1.0
    %v1595 = vadd.f32 %v1593, 1.0
    %v1596 = vmul.f32 %v1580, %v1594
    %v1597 = vmul.f32 %v1581, %v1595
    %s1598 = scalar_lea.vmem %s43, 64
    %v1599 = vld [vmem:[%s1598] sm:$0xff]
    %v1600 = vld [vmem:[%s1598 + $0x8] sm:$0xff]
    %v1601 = vld [vmem:[%s1598 + $0x10] sm:$0xff]
    %v1602 = vld [vmem:[%s1598 + $0x18] sm:$0xff]
    %v1603 = vld [vmem:[%s1598 + $0x20] sm:$0xff]
    %v1604 = vld [vmem:[%s1598 + $0x28] sm:$0xff]
    %v1605 = vld [vmem:[%s1598 + $0x30] sm:$0xff]
    %v1606 = vld [vmem:[%s1598 + $0x38] sm:$0xff]
    %s1607 = scalar_lea.vmem %s45, 1
    %v1608 = vld [vmem:[%s1607] sm:$0x1]
    %v1610 = vperm.slane %v1608, 0
    %v1613 = vsel %vm171, %v1596, 0
    %v1616 = vsel %vm171, %v1597, 0
    %1618 = vmatpush.msra.mxu0 0.0
    %1619 = vmatpush.msra.mxu0 0.0
    %1620 = vmatpush.msra.mxu0 0.0
    %1621 = vmatpush.msra.mxu0 0.0
    %1622 = vmatpush.msra.mxu0 0.0
    %1623 = vmatpush.msra.mxu0 0.0
    %1624 = vmatpush.msra.mxu0 0.0
    %1625 = vmatpush.msra.mxu0 0.0
    %1626 = vmatpush.msra.mxu0 %v1606
    %1627 = vmatpush.msra.mxu0 %v1605
    %1628 = vmatpush.msra.mxu0 %v1604
    %1629 = vmatpush.msra.mxu0 %v1603
    %1630 = vmatpush.msra.mxu0 %v1602
    %1631 = vmatpush.msra.mxu0 %v1601
    %1632 = vmatpush.msra.mxu0 %v1600
    %1633 = vmatpush.msra.mxu0 %v1599
    %1634 = vmatmul.f32.gmra.mxu0 %v1613
    %v1635 = vpop.f32.mrf.mxu0
    %v1636 = vadd.f32 %v1610, %v1635
    %1637 = vmatmul.f32.gmra.mxu0 %v1616
    %v1638 = vpop.f32.mrf.mxu0
    %v1639 = vadd.f32 %v1610, %v1638
    %1640 = vdwg.mxu0
    %v1641 = vadd.f32 %v1539, %v1636
    %v1642 = vadd.f32 %v1540, %v1639
    %s1643 = scalar_lea.vmem %s47, 1
    %v1644 = vld [vmem:[%s1643] sm:$0x1]
    %s1645 = scalar_lea.vmem %s49, 1
    %v1646 = vld [vmem:[%s1645] sm:$0x1]
    %v1647 = vsel %vm129, %v1641, 0.0
    %1648 = vadd.xlane.f32.xlu0 %v1647
    %v1649 = vpop.xlane.xlu0 %1648
    %v1650 = vsel %vm129, %v1642, 0.0
    %1651 = vadd.xlane.f32.xlu0 %v1650
    %v1652 = vpop.xlane.xlu0 %1651
    %v1653 = vmul.f32 %v1649, %v219
    %v1654 = vmul.f32 %v1652, %v219
    %v1655 = vsub.f32 %v1641, %v1653
    %v1656 = vsub.f32 %v1642, %v1654
    %v1657 = vmul.f32 %v1655, %v1655
    %v1658 = vmul.f32 %v1656, %v1656
    %v1659 = vsel %vm129, %v1657, 0.0
    %1660 = vadd.xlane.f32.xlu0 %v1659
    %v1661 = vpop.xlane.xlu0 %1660
    %v1662 = vsel %vm129, %v1658, 0.0
    %1663 = vadd.xlane.f32.xlu0 %v1662
    %v1664 = vpop.xlane.xlu0 %1663
    %v1665 = vmul.f32 %v1661, %v219
    %v1666 = vmul.f32 %v1664, %v219
    %v1667 = vadd.f32 %v1665, 1e-12
    %v1668 = vadd.f32 %v1666, 1e-12
    %v1669 = vrsqrt.pop %v1667
    %v1670 = vmul.f32 %v1669, %v1667
    %v1671 = vmul.f32 %v1670, %v1669
    %v1672 = vmul.f32 0.5, %v1671
    %v1673 = vsub.f32 1.5, %v1672
    %v1674 = vmul.f32 %v1669, %v1673
    %vm1675 = vweird.f32 %v1667
    %vm1676 = vweird.f32 %v1669
    %vm1677 = vmor %vm1675, %vm1676
    %v1678 = vsel %vm1677, %v1669, %v1674
    %v1679 = vrsqrt.pop %v1668
    %v1680 = vmul.f32 %v1679, %v1668
    %v1681 = vmul.f32 %v1680, %v1679
    %v1682 = vmul.f32 0.5, %v1681
    %v1683 = vsub.f32 1.5, %v1682
    %v1684 = vmul.f32 %v1679, %v1683
    %vm1685 = vweird.f32 %v1668
    %vm1686 = vweird.f32 %v1679
    %vm1687 = vmor %vm1685, %vm1686
    %v1688 = vsel %vm1687, %v1679, %v1684
    %v1689 = vmul.f32 %v1655, %v1678
    %v1690 = vmul.f32 %v1656, %v1688
    %v1692 = vperm.slane %v1644, 0
    %v1694 = vmul.f32 %v1689, %v1692
    %v1695 = vmul.f32 %v1690, %v1692
    %v1697 = vperm.slane %v1646, 0
    %v1699 = vadd.f32 %v1694, %v1697
    %v1700 = vadd.f32 %v1695, %v1697
    %v1701 = vld [vmem:[%s7] sm:$0x3]
    %v1703 = vsel %vm415, %v1701, 0
    %1705 = vmatpush.msra.mxu0 0.0
    %1706 = vmatpush.msra.mxu0 0.0
    %1707 = vmatpush.msra.mxu0 0.0
    %1708 = vmatpush.msra.mxu0 0.0
    %1709 = vmatpush.msra.mxu0 0.0
    %1710 = vmatpush.msra.mxu0 0.0
    %1711 = vmatpush.msra.mxu0 0.0
    %1712 = vmatpush.msra.mxu0 0.0
    %1713 = vmatpush.msra.mxu0 0.0
    %1714 = vmatpush.msra.mxu0 0.0
    %1715 = vmatpush.msra.mxu0 0.0
    %1716 = vmatpush.msra.mxu0 0.0
    %1717 = vmatpush.msra.mxu0 0.0
    %1718 = vmatpush.msra.mxu0 0.0
    %1719 = vmatpush.msra.mxu0 %v1700
    %1720 = vmatpush.msra.mxu0 %v1699
    %1721 = vmatmul.f32.gmra.mxu0 %v1703
    %v1722 = vpop.f32.mrf.mxu0
    %v1723 = vadd.f32 0.0, %v1722
    %1724 = vdwg.mxu0
    %v1725 = vld [vmem:[%s51] sm:$0xff]
    %v1726 = vld [vmem:[%s51 + $0x8] sm:$0xff]
    %v1727 = vld [vmem:[%s51 + $0x10] sm:$0xff]
    %v1728 = vld [vmem:[%s51 + $0x18] sm:$0xff]
    %v1729 = vld [vmem:[%s53] sm:$0x1]
    %v1731 = vperm.slane %v1729, 0
    %v1734 = vsel %vm129, %v1723, 0
    %1736 = vmatpush.msra.mxu0 0.0
    %1737 = vmatpush.msra.mxu0 0.0
    %1738 = vmatpush.msra.mxu0 0.0
    %1739 = vmatpush.msra.mxu0 0.0
    %1740 = vmatpush.msra.mxu0 0.0
    %1741 = vmatpush.msra.mxu0 0.0
    %1742 = vmatpush.msra.mxu0 0.0
    %1743 = vmatpush.msra.mxu0 0.0
    %1744 = vmatpush.msra.mxu0 0.0
    %1745 = vmatpush.msra.mxu0 0.0
    %1746 = vmatpush.msra.mxu0 0.0
    %1747 = vmatpush.msra.mxu0 0.0
    %1748 = vmatpush.msra.mxu0 %v1728
    %1749 = vmatpush.msra.mxu0 %v1727
    %1750 = vmatpush.msra.mxu0 %v1726
    %1751 = vmatpush.msra.mxu0 %v1725
    %1752 = vmatmul.f32.gmra.mxu0 %v1734
    %v1753 = vpop.f32.mrf.mxu0
    %v1754 = vadd.f32 %v1731, %v1753
    %1755 = vdwg.mxu0
    %v1756 = vtanh.pop %v1754
    %v1757 = vld [vmem:[%s55] sm:$0xff]
    %v1758 = vld [vmem:[%s55 + $0x8] sm:$0xff]
    %v1759 = vld [vmem:[%s55 + $0x10] sm:$0xff]
    %v1760 = vld [vmem:[%s55 + $0x18] sm:$0xff]
    %v1761 = vld [vmem:[%s57] sm:$0x1]
    %v1763 = vperm.slane %v1761, 0
    %v1766 = vsel %vm129, %v1756, 0
    %1768 = vmatpush.msra.mxu0 0.0
    %1769 = vmatpush.msra.mxu0 0.0
    %1770 = vmatpush.msra.mxu0 0.0
    %1771 = vmatpush.msra.mxu0 0.0
    %1772 = vmatpush.msra.mxu0 0.0
    %1773 = vmatpush.msra.mxu0 0.0
    %1774 = vmatpush.msra.mxu0 0.0
    %1775 = vmatpush.msra.mxu0 0.0
    %1776 = vmatpush.msra.mxu0 0.0
    %1777 = vmatpush.msra.mxu0 0.0
    %1778 = vmatpush.msra.mxu0 0.0
    %1779 = vmatpush.msra.mxu0 0.0
    %1780 = vmatpush.msra.mxu0 %v1760
    %1781 = vmatpush.msra.mxu0 %v1759
    %1782 = vmatpush.msra.mxu0 %v1758
    %1783 = vmatpush.msra.mxu0 %v1757
    %1784 = vmatmul.f32.gmra.mxu0 %v1766
    %v1785 = vpop.f32.mrf.mxu0
    %v1786 = vadd.f32 %v1763, %v1785
    %1787 = vdwg.mxu0
    %vm1788 = vcmask 9216
    %1789 = vst.msk [vmem:[#allocation2] sm:$0x3] %vm1788, %v1786
    // Predicated region
    $region118: #{forward.1} parent=1 // pred_check
      _
    $region119: #{forward.1} parent=1 // pred_check_branch
      %1791 = sbr.rel (0) target = $region121
    $region120: #{forward.1} parent=1 // pred_region
      %1793 = vsyncadd [#allocation3], 0
      %s1795 = sshll.u32 [#allocation2], 4
      %s1796 = int_to_ptr.vmem [resolvable:$true] %s1795
      %s1797 = sshll.u32 %s59, 4
      %s1798 = int_to_ptr.hbm [resolvable:$true] %s1797
      %1800 = dma.vmem_to_hbm [thread:$0]  %s1796, 32, %s1798, [#allocation3]
    $region121: #{forward.1} parent=1 // pred_fallthru
      _
    // Predicated region
    $region122: #{forward.1} parent=1 // pred_check
      _
    $region123: #{forward.1} parent=1 // pred_check_branch
      %1802 = sbr.rel (0) target = $region125
    $region124: #{forward.1} parent=1 // pred_region
      %1804 = dma.done [#allocation3], 32
    $region125: #{forward.1} parent=1 // pred_fallthru
      _
    %1805 = vsyncpa [#allocation3], 1

</llo_original>
